<compile_context>
chip_gen: v7x
topology: tpu7x:2x2x1
jax: 0.10.0
libtpu: 0.0.40
codegen_flags: <defaults>
</compile_context>

<pallas_src>
import functools

import jax
import jax.numpy as jnp
from jax.experimental import pallas as pl
from jax.experimental.pallas import tpu as pltpu

_EPS = 1e-5  # nn.BatchNorm2d default
_TAPS = tuple((dy, dx) for dy in range(3) for dx in range(3))


def _bn_relu(y, gamma, beta, mask, inv_count):
    """Training-mode BN (biased batch variance) + ReLU on (N, C, L) f32.

    `mask` (1,1,L) zeroes the stride-padding "junk" columns so the statistics
    are taken over exactly N*H*W valid elements.  Single pass: sum and
    sum-of-squares, var = E[y^2] - mean^2.  gamma/beta come in as (1, C, 1).
    """
    ym = y * mask
    s = jnp.sum(jnp.sum(ym, axis=2, keepdims=True), axis=0, keepdims=True)
    q = jnp.sum(jnp.sum(ym * ym, axis=2, keepdims=True), axis=0, keepdims=True)
    mean = s * inv_count
    var = jnp.maximum(q * inv_count - mean * mean, 0.0)
    scale = gamma * jax.lax.rsqrt(var + _EPS)          # rsqrt -> EUP slot
    shift = beta - mean * scale
    return jnp.maximum(y * scale + shift, 0.0)


def input_conv_kernel(x_ref, mask_ref, w1_ref, g1_ref, be1_ref,
                      w2_ref, g2_ref, be2_ref, o_ref,
                      c1_s, p1_s, c2_s, p2_s, y_s, *, H, W):
    N, Cin, _ = x_ref.shape                   # x is (N, Cin, H*W)
    Cout = w1_ref.shape[0]
    Wp = W + 2                                # padded width
    L = H * Wp - 2                            # columns of the patch matrices
    inv_count = 1.0 / float(N * H * W)
    mask = mask_ref[...]                      # (1, 1, L): 1 where col%Wp < W

    # ---- input -> zero-padded flat canvas (padding folded into the kernel) --
    c1_s[...] = jnp.zeros(c1_s.shape, c1_s.dtype)
    for h in range(H):
        base = (h + 1) * Wp + 1
        c1_s[:, :, base:base + W] = x_ref[:, :, h * W:(h + 1) * W]

    # ---- conv1: 9 shifted lane-slices -> single K = 9*Cin matmul ------------
    for t, (dy, dx) in enumerate(_TAPS):
        s = dy * Wp + dx                      # tap = pure lane shift
        p1_s[:, t * Cin:(t + 1) * Cin, :] = c1_s[:, :, s:s + L]
    w1 = w1_ref[...]                          # (Cout, 9*Cin) bf16
    for n in range(N):                        # small static batch -> unrolled
        y_s[n] = jnp.dot(w1, p1_s[n].astype(jnp.bfloat16),
                         preferred_element_type=jnp.float32)

    # ---- BN1 + ReLU (lane-dense), write interior of the conv2 canvas --------
    y1 = _bn_relu(y_s[...], g1_ref[...], be1_ref[...], mask, inv_count)
    c2_s[...] = jnp.zeros(c2_s.shape, c2_s.dtype)
    # masking keeps the zero padding of the conv2 canvas intact
    c2_s[:, :, Wp + 1:Wp + 1 + L] = y1 * mask

    # ---- conv2: same scheme, K = 9*Cout -------------------------------------
    for t, (dy, dx) in enumerate(_TAPS):
        s = dy * Wp + dx
        p2_s[:, t * Cout:(t + 1) * Cout, :] = c2_s[:, :, s:s + L]
    w2 = w2_ref[...]                          # (Cout, 9*Cout) bf16
    for n in range(N):
        y_s[n] = jnp.dot(w2, p2_s[n].astype(jnp.bfloat16),
                         preferred_element_type=jnp.float32)

    # ---- BN2 + ReLU, compact stride-Wp columns into the dense NCHW output ---
    y2 = _bn_relu(y_s[...], g2_ref[...], be2_ref[...], mask, inv_count)
    for h in range(H):
        o_ref[:, :, h * W:(h + 1) * W] = y2[:, :, h * Wp:h * Wp + W]


def init_params(key, cin, cout):
    """Synthetic parameters in PyTorch layouts (weights: (Cout, Cin, 3, 3)).

    Conv biases are intentionally omitted: a per-channel constant added right
    before training-mode BatchNorm is removed exactly by the batch-mean
    subtraction, so the forward output is identical without them.
    """
    k1, k2 = jax.random.split(key, 2)
    w1 = jax.random.normal(k1, (cout, cin, 3, 3), jnp.float32) * (2.0 / (9 * cin)) ** 0.5
    w2 = jax.random.normal(k2, (cout, cout, 3, 3), jnp.float32) * (2.0 / (9 * cout)) ** 0.5
    g1 = jnp.ones((cout,), jnp.float32)
    be1 = jnp.zeros((cout,), jnp.float32)
    g2 = jnp.ones((cout,), jnp.float32)
    be2 = jnp.zeros((cout,), jnp.float32)
    return dict(w1=w1, g1=g1, be1=be1, w2=w2, g2=g2, be2=be2)


def _to_matmul_weight(w_oihw):
    """(Cout, Cin, 3, 3) -> (Cout, 9*Cin) bf16, column order (dy, dx, ci)."""
    cout, cin = w_oihw.shape[0], w_oihw.shape[1]
    return (jnp.transpose(w_oihw, (0, 2, 3, 1))
            .reshape(cout, 9 * cin).astype(jnp.bfloat16))


@jax.jit
def input_conv(x_nchw, params):
    x = x_nchw.astype(jnp.float32)            # NCHW consumed directly
    N, Cin, H, W = x.shape
    Cout = params["w1"].shape[0]
    Hp, Wp = H + 2, W + 2
    HW = H * W
    L = H * Wp - 2

    x_flat = x.reshape(N, Cin, HW)            # free: contiguous NCHW reshape
    w1m = _to_matmul_weight(params["w1"])
    w2m = _to_matmul_weight(params["w2"])
    g1 = params["g1"].reshape(1, Cout, 1).astype(jnp.float32)
    be1 = params["be1"].reshape(1, Cout, 1).astype(jnp.float32)
    g2 = params["g2"].reshape(1, Cout, 1).astype(jnp.float32)
    be2 = params["be2"].reshape(1, Cout, 1).astype(jnp.float32)
    # valid-column mask for the stride-Wp patch/output columns (tiny constant)
    col = jnp.arange(L, dtype=jnp.int32)
    mask = ((col % Wp) < W).astype(jnp.float32).reshape(1, 1, L)

    vmem = pl.BlockSpec(memory_space=pltpu.MemorySpace.VMEM)
    kernel = functools.partial(input_conv_kernel, H=H, W=W)
    out = pl.pallas_call(
        kernel,
        out_shape=jax.ShapeDtypeStruct((N, Cout, HW), jnp.float32),
        in_specs=[vmem] * 8,
        out_specs=vmem,
        scratch_shapes=[
            pltpu.VMEM((N, Cin, Hp * Wp), jnp.float32),    # padded input canvas
            pltpu.VMEM((N, 9 * Cin, L), jnp.float32),      # im2col, conv1
            pltpu.VMEM((N, Cout, Hp * Wp), jnp.float32),   # padded mid canvas
            pltpu.VMEM((N, 9 * Cout, L), jnp.float32),     # im2col, conv2
            pltpu.VMEM((N, Cout, L), jnp.float32),         # conv output staging
        ],
        compiler_params=pltpu.CompilerParams(
            vmem_limit_bytes=64 * 1024 * 1024),
    )(x_flat, mask, w1m, g1, be1, w2m, g2, be2)

    # (N, Cout, H*W) is NCHW modulo a free metadata reshape.
    return out.reshape(N, Cout, H, W)


if __name__ == "__main__":
    key = jax.random.PRNGKey(0)
    kx, kp = jax.random.split(key)

    N, Cin, H, W = 2, 4, 16, 16
    Cout = 8
    x = jax.random.normal(kx, (N, Cin, H, W), jnp.float32)
    params = init_params(kp, Cin, Cout)

    y = input_conv(x, params)
    jax.block_until_ready(y)
    assert y.shape == (N, Cout, H, W), y.shape
    print("KERNEL_OK")
</pallas_src>

<mosaic_0001>
module attributes {stable_mosaic.version = 11 : i64} {
  func.func @input_conv_kernel(%arg0: memref<2x4x256xf32, #tpu.memory_space<vmem>>, %arg1: memref<1x1x286xf32, #tpu.memory_space<vmem>>, %arg2: memref<8x36xbf16, #tpu.memory_space<vmem>>, %arg3: memref<1x8x1xf32, #tpu.memory_space<vmem>>, %arg4: memref<1x8x1xf32, #tpu.memory_space<vmem>>, %arg5: memref<8x72xbf16, #tpu.memory_space<vmem>>, %arg6: memref<1x8x1xf32, #tpu.memory_space<vmem>>, %arg7: memref<1x8x1xf32, #tpu.memory_space<vmem>>, %arg8: memref<2x8x256xf32, #tpu.memory_space<vmem>>, %arg9: memref<2x4x324xf32, #tpu.memory_space<vmem>>, %arg10: memref<2x36x286xf32, #tpu.memory_space<vmem>>, %arg11: memref<2x8x324xf32, #tpu.memory_space<vmem>>, %arg12: memref<2x72x286xf32, #tpu.memory_space<vmem>>, %arg13: memref<2x8x286xf32, #tpu.memory_space<vmem>>) attributes {dimension_semantics = [], scalar_prefetch = 0 : i64, scratch_operands = 5 : i64, tpu.core_type = #tpu.core_type<tc>} {
    %c0 = arith.constant 0 : index
    %c0_0 = arith.constant 0 : index
    %c0_1 = arith.constant 0 : index
    %0 = vector.load %arg1[%c0, %c0_0, %c0_1] : memref<1x1x286xf32, #tpu.memory_space<vmem>>, vector<1x1x286xf32>
    %cst = arith.constant 0.000000e+00 : f32
    %1 = vector.broadcast %cst : f32 to vector<2x4x324xf32>
    %c0_2 = arith.constant 0 : index
    %c0_3 = arith.constant 0 : index
    %c0_4 = arith.constant 0 : index
    %2 = vector.load %arg9[%c0_2, %c0_3, %c0_4] : memref<2x4x324xf32, #tpu.memory_space<vmem>>, vector<2x4x324xf32>
    tpu.vector_store %arg9[%c0_2, %c0_3, %c0_4], %1 {strides = array<i32>} : memref<2x4x324xf32, #tpu.memory_space<vmem>>, vector<2x4x324xf32>,
    %c0_5 = arith.constant 0 : index
    %c0_6 = arith.constant 0 : index
    %c0_7 = arith.constant 0 : index
    %3 = vector.load %arg0[%c0_5, %c0_6, %c0_7] : memref<2x4x256xf32, #tpu.memory_space<vmem>>, vector<2x4x16xf32>
    %c0_8 = arith.constant 0 : index
    %c0_9 = arith.constant 0 : index
    %c19 = arith.constant 19 : index
    %4 = vector.load %arg9[%c0_8, %c0_9, %c19] : memref<2x4x324xf32, #tpu.memory_space<vmem>>, vector<2x4x16xf32>
    tpu.vector_store %arg9[%c0_8, %c0_9, %c19], %3 {strides = array<i32>} : memref<2x4x324xf32, #tpu.memory_space<vmem>>, vector<2x4x16xf32>,
    %c0_10 = arith.constant 0 : index
    %c0_11 = arith.constant 0 : index
    %c16 = arith.constant 16 : index
    %5 = vector.load %arg0[%c0_10, %c0_11, %c16] : memref<2x4x256xf32, #tpu.memory_space<vmem>>, vector<2x4x16xf32>
    %c0_12 = arith.constant 0 : index
    %c0_13 = arith.constant 0 : index
    %c37 = arith.constant 37 : index
    %6 = vector.load %arg9[%c0_12, %c0_13, %c37] : memref<2x4x324xf32, #tpu.memory_space<vmem>>, vector<2x4x16xf32>
    tpu.vector_store %arg9[%c0_12, %c0_13, %c37], %5 {strides = array<i32>} : memref<2x4x324xf32, #tpu.memory_space<vmem>>, vector<2x4x16xf32>,
    %c0_14 = arith.constant 0 : index
    %c0_15 = arith.constant 0 : index
    %c32 = arith.constant 32 : index
    %7 = vector.load %arg0[%c0_14, %c0_15, %c32] : memref<2x4x256xf32, #tpu.memory_space<vmem>>, vector<2x4x16xf32>
    %c0_16 = arith.constant 0 : index
    %c0_17 = arith.constant 0 : index
    %c55 = arith.constant 55 : index
    %8 = vector.load %arg9[%c0_16, %c0_17, %c55] : memref<2x4x324xf32, #tpu.memory_space<vmem>>, vector<2x4x16xf32>
    tpu.vector_store %arg9[%c0_16, %c0_17, %c55], %7 {strides = array<i32>} : memref<2x4x324xf32, #tpu.memory_space<vmem>>, vector<2x4x16xf32>,
    %c0_18 = arith.constant 0 : index
    %c0_19 = arith.constant 0 : index
    %c48 = arith.constant 48 : index
    %9 = vector.load %arg0[%c0_18, %c0_19, %c48] : memref<2x4x256xf32, #tpu.memory_space<vmem>>, vector<2x4x16xf32>
    %c0_20 = arith.constant 0 : index
    %c0_21 = arith.constant 0 : index
    %c73 = arith.constant 73 : index
    %10 = vector.load %arg9[%c0_20, %c0_21, %c73] : memref<2x4x324xf32, #tpu.memory_space<vmem>>, vector<2x4x16xf32>
    tpu.vector_store %arg9[%c0_20, %c0_21, %c73], %9 {strides = array<i32>} : memref<2x4x324xf32, #tpu.memory_space<vmem>>, vector<2x4x16xf32>,
    %c0_22 = arith.constant 0 : index
    %c0_23 = arith.constant 0 : index
    %c64 = arith.constant 64 : index
    %11 = vector.load %arg0[%c0_22, %c0_23, %c64] : memref<2x4x256xf32, #tpu.memory_space<vmem>>, vector<2x4x16xf32>
    %c0_24 = arith.constant 0 : index
    %c0_25 = arith.constant 0 : index
    %c91 = arith.constant 91 : index
    %12 = vector.load %arg9[%c0_24, %c0_25, %c91] : memref<2x4x324xf32, #tpu.memory_space<vmem>>, vector<2x4x16xf32>
    tpu.vector_store %arg9[%c0_24, %c0_25, %c91], %11 {strides = array<i32>} : memref<2x4x324xf32, #tpu.memory_space<vmem>>, vector<2x4x16xf32>,
    %c0_26 = arith.constant 0 : index
    %c0_27 = arith.constant 0 : index
    %c80 = arith.constant 80 : index
    %13 = vector.load %arg0[%c0_26, %c0_27, %c80] : memref<2x4x256xf32, #tpu.memory_space<vmem>>, vector<2x4x16xf32>
    %c0_28 = arith.constant 0 : index
    %c0_29 = arith.constant 0 : index
    %c109 = arith.constant 109 : index
    %14 = vector.load %arg9[%c0_28, %c0_29, %c109] : memref<2x4x324xf32, #tpu.memory_space<vmem>>, vector<2x4x16xf32>
    tpu.vector_store %arg9[%c0_28, %c0_29, %c109], %13 {strides = array<i32>} : memref<2x4x324xf32, #tpu.memory_space<vmem>>, vector<2x4x16xf32>,
    %c0_30 = arith.constant 0 : index
    %c0_31 = arith.constant 0 : index
    %c96 = arith.constant 96 : index
    %15 = vector.load %arg0[%c0_30, %c0_31, %c96] : memref<2x4x256xf32, #tpu.memory_space<vmem>>, vector<2x4x16xf32>
    %c0_32 = arith.constant 0 : index
    %c0_33 = arith.constant 0 : index
    %c127 = arith.constant 127 : index
    %16 = vector.load %arg9[%c0_32, %c0_33, %c127] : memref<2x4x324xf32, #tpu.memory_space<vmem>>, vector<2x4x16xf32>
    tpu.vector_store %arg9[%c0_32, %c0_33, %c127], %15 {strides = array<i32>} : memref<2x4x324xf32, #tpu.memory_space<vmem>>, vector<2x4x16xf32>,
    %c0_34 = arith.constant 0 : index
    %c0_35 = arith.constant 0 : index
    %c112 = arith.constant 112 : index
    %17 = vector.load %arg0[%c0_34, %c0_35, %c112] : memref<2x4x256xf32, #tpu.memory_space<vmem>>, vector<2x4x16xf32>
    %c0_36 = arith.constant 0 : index
    %c0_37 = arith.constant 0 : index
    %c145 = arith.constant 145 : index
    %18 = vector.load %arg9[%c0_36, %c0_37, %c145] : memref<2x4x324xf32, #tpu.memory_space<vmem>>, vector<2x4x16xf32>
    tpu.vector_store %arg9[%c0_36, %c0_37, %c145], %17 {strides = array<i32>} : memref<2x4x324xf32, #tpu.memory_space<vmem>>, vector<2x4x16xf32>,
    %c0_38 = arith.constant 0 : index
    %c0_39 = arith.constant 0 : index
    %c128 = arith.constant 128 : index
    %19 = vector.load %arg0[%c0_38, %c0_39, %c128] : memref<2x4x256xf32, #tpu.memory_space<vmem>>, vector<2x4x16xf32>
    %c0_40 = arith.constant 0 : index
    %c0_41 = arith.constant 0 : index
    %c163 = arith.constant 163 : index
    %20 = vector.load %arg9[%c0_40, %c0_41, %c163] : memref<2x4x324xf32, #tpu.memory_space<vmem>>, vector<2x4x16xf32>
    tpu.vector_store %arg9[%c0_40, %c0_41, %c163], %19 {strides = array<i32>} : memref<2x4x324xf32, #tpu.memory_space<vmem>>, vector<2x4x16xf32>,
    %c0_42 = arith.constant 0 : index
    %c0_43 = arith.constant 0 : index
    %c144 = arith.constant 144 : index
    %21 = vector.load %arg0[%c0_42, %c0_43, %c144] : memref<2x4x256xf32, #tpu.memory_space<vmem>>, vector<2x4x16xf32>
    %c0_44 = arith.constant 0 : index
    %c0_45 = arith.constant 0 : index
    %c181 = arith.constant 181 : index
    %22 = vector.load %arg9[%c0_44, %c0_45, %c181] : memref<2x4x324xf32, #tpu.memory_space<vmem>>, vector<2x4x16xf32>
    tpu.vector_store %arg9[%c0_44, %c0_45, %c181], %21 {strides = array<i32>} : memref<2x4x324xf32, #tpu.memory_space<vmem>>, vector<2x4x16xf32>,
    %c0_46 = arith.constant 0 : index
    %c0_47 = arith.constant 0 : index
    %c160 = arith.constant 160 : index
    %23 = vector.load %arg0[%c0_46, %c0_47, %c160] : memref<2x4x256xf32, #tpu.memory_space<vmem>>, vector<2x4x16xf32>
    %c0_48 = arith.constant 0 : index
    %c0_49 = arith.constant 0 : index
    %c199 = arith.constant 199 : index
    %24 = vector.load %arg9[%c0_48, %c0_49, %c199] : memref<2x4x324xf32, #tpu.memory_space<vmem>>, vector<2x4x16xf32>
    tpu.vector_store %arg9[%c0_48, %c0_49, %c199], %23 {strides = array<i32>} : memref<2x4x324xf32, #tpu.memory_space<vmem>>, vector<2x4x16xf32>,
    %c0_50 = arith.constant 0 : index
    %c0_51 = arith.constant 0 : index
    %c176 = arith.constant 176 : index
    %25 = vector.load %arg0[%c0_50, %c0_51, %c176] : memref<2x4x256xf32, #tpu.memory_space<vmem>>, vector<2x4x16xf32>
    %c0_52 = arith.constant 0 : index
    %c0_53 = arith.constant 0 : index
    %c217 = arith.constant 217 : index
    %26 = vector.load %arg9[%c0_52, %c0_53, %c217] : memref<2x4x324xf32, #tpu.memory_space<vmem>>, vector<2x4x16xf32>
    tpu.vector_store %arg9[%c0_52, %c0_53, %c217], %25 {strides = array<i32>} : memref<2x4x324xf32, #tpu.memory_space<vmem>>, vector<2x4x16xf32>,
    %c0_54 = arith.constant 0 : index
    %c0_55 = arith.constant 0 : index
    %c192 = arith.constant 192 : index
    %27 = vector.load %arg0[%c0_54, %c0_55, %c192] : memref<2x4x256xf32, #tpu.memory_space<vmem>>, vector<2x4x16xf32>
    %c0_56 = arith.constant 0 : index
    %c0_57 = arith.constant 0 : index
    %c235 = arith.constant 235 : index
    %28 = vector.load %arg9[%c0_56, %c0_57, %c235] : memref<2x4x324xf32, #tpu.memory_space<vmem>>, vector<2x4x16xf32>
    tpu.vector_store %arg9[%c0_56, %c0_57, %c235], %27 {strides = array<i32>} : memref<2x4x324xf32, #tpu.memory_space<vmem>>, vector<2x4x16xf32>,
    %c0_58 = arith.constant 0 : index
    %c0_59 = arith.constant 0 : index
    %c208 = arith.constant 208 : index
    %29 = vector.load %arg0[%c0_58, %c0_59, %c208] : memref<2x4x256xf32, #tpu.memory_space<vmem>>, vector<2x4x16xf32>
    %c0_60 = arith.constant 0 : index
    %c0_61 = arith.constant 0 : index
    %c253 = arith.constant 253 : index
    %30 = vector.load %arg9[%c0_60, %c0_61, %c253] : memref<2x4x324xf32, #tpu.memory_space<vmem>>, vector<2x4x16xf32>
    tpu.vector_store %arg9[%c0_60, %c0_61, %c253], %29 {strides = array<i32>} : memref<2x4x324xf32, #tpu.memory_space<vmem>>, vector<2x4x16xf32>,
    %c0_62 = arith.constant 0 : index
    %c0_63 = arith.constant 0 : index
    %c224 = arith.constant 224 : index
    %31 = vector.load %arg0[%c0_62, %c0_63, %c224] : memref<2x4x256xf32, #tpu.memory_space<vmem>>, vector<2x4x16xf32>
    %c0_64 = arith.constant 0 : index
    %c0_65 = arith.constant 0 : index
    %c271 = arith.constant 271 : index
    %32 = vector.load %arg9[%c0_64, %c0_65, %c271] : memref<2x4x324xf32, #tpu.memory_space<vmem>>, vector<2x4x16xf32>
    tpu.vector_store %arg9[%c0_64, %c0_65, %c271], %31 {strides = array<i32>} : memref<2x4x324xf32, #tpu.memory_space<vmem>>, vector<2x4x16xf32>,
    %c0_66 = arith.constant 0 : index
    %c0_67 = arith.constant 0 : index
    %c240 = arith.constant 240 : index
    %33 = vector.load %arg0[%c0_66, %c0_67, %c240] : memref<2x4x256xf32, #tpu.memory_space<vmem>>, vector<2x4x16xf32>
    %c0_68 = arith.constant 0 : index
    %c0_69 = arith.constant 0 : index
    %c289 = arith.constant 289 : index
    %34 = vector.load %arg9[%c0_68, %c0_69, %c289] : memref<2x4x324xf32, #tpu.memory_space<vmem>>, vector<2x4x16xf32>
    tpu.vector_store %arg9[%c0_68, %c0_69, %c289], %33 {strides = array<i32>} : memref<2x4x324xf32, #tpu.memory_space<vmem>>, vector<2x4x16xf32>,
    %c0_70 = arith.constant 0 : index
    %c0_71 = arith.constant 0 : index
    %c0_72 = arith.constant 0 : index
    %35 = vector.load %arg9[%c0_70, %c0_71, %c0_72] : memref<2x4x324xf32, #tpu.memory_space<vmem>>, vector<2x4x286xf32>
    %c0_73 = arith.constant 0 : index
    %c0_74 = arith.constant 0 : index
    %c0_75 = arith.constant 0 : index
    %36 = vector.load %arg10[%c0_73, %c0_74, %c0_75] : memref<2x36x286xf32, #tpu.memory_space<vmem>>, vector<2x4x286xf32>
    tpu.vector_store %arg10[%c0_73, %c0_74, %c0_75], %35 {strides = array<i32>} : memref<2x36x286xf32, #tpu.memory_space<vmem>>, vector<2x4x286xf32>,
    %c0_76 = arith.constant 0 : index
    %c0_77 = arith.constant 0 : index
    %c1 = arith.constant 1 : index
    %37 = vector.load %arg9[%c0_76, %c0_77, %c1] : memref<2x4x324xf32, #tpu.memory_space<vmem>>, vector<2x4x286xf32>
    %c0_78 = arith.constant 0 : index
    %c4 = arith.constant 4 : index
    %c0_79 = arith.constant 0 : index
    %38 = vector.load %arg10[%c0_78, %c4, %c0_79] : memref<2x36x286xf32, #tpu.memory_space<vmem>>, vector<2x4x286xf32>
    tpu.vector_store %arg10[%c0_78, %c4, %c0_79], %37 {strides = array<i32>} : memref<2x36x286xf32, #tpu.memory_space<vmem>>, vector<2x4x286xf32>,
    %c0_80 = arith.constant 0 : index
    %c0_81 = arith.constant 0 : index
    %c2 = arith.constant 2 : index
    %39 = vector.load %arg9[%c0_80, %c0_81, %c2] : memref<2x4x324xf32, #tpu.memory_space<vmem>>, vector<2x4x286xf32>
    %c0_82 = arith.constant 0 : index
    %c8 = arith.constant 8 : index
    %c0_83 = arith.constant 0 : index
    %40 = vector.load %arg10[%c0_82, %c8, %c0_83] : memref<2x36x286xf32, #tpu.memory_space<vmem>>, vector<2x4x286xf32>
    tpu.vector_store %arg10[%c0_82, %c8, %c0_83], %39 {strides = array<i32>} : memref<2x36x286xf32, #tpu.memory_space<vmem>>, vector<2x4x286xf32>,
    %c0_84 = arith.constant 0 : index
    %c0_85 = arith.constant 0 : index
    %c18 = arith.constant 18 : index
    %41 = vector.load %arg9[%c0_84, %c0_85, %c18] : memref<2x4x324xf32, #tpu.memory_space<vmem>>, vector<2x4x286xf32>
    %c0_86 = arith.constant 0 : index
    %c12 = arith.constant 12 : index
    %c0_87 = arith.constant 0 : index
    %42 = vector.load %arg10[%c0_86, %c12, %c0_87] : memref<2x36x286xf32, #tpu.memory_space<vmem>>, vector<2x4x286xf32>
    tpu.vector_store %arg10[%c0_86, %c12, %c0_87], %41 {strides = array<i32>} : memref<2x36x286xf32, #tpu.memory_space<vmem>>, vector<2x4x286xf32>,
    %c0_88 = arith.constant 0 : index
    %c0_89 = arith.constant 0 : index
    %c19_90 = arith.constant 19 : index
    %43 = vector.load %arg9[%c0_88, %c0_89, %c19_90] : memref<2x4x324xf32, #tpu.memory_space<vmem>>, vector<2x4x286xf32>
    %c0_91 = arith.constant 0 : index
    %c16_92 = arith.constant 16 : index
    %c0_93 = arith.constant 0 : index
    %44 = vector.load %arg10[%c0_91, %c16_92, %c0_93] : memref<2x36x286xf32, #tpu.memory_space<vmem>>, vector<2x4x286xf32>
    tpu.vector_store %arg10[%c0_91, %c16_92, %c0_93], %43 {strides = array<i32>} : memref<2x36x286xf32, #tpu.memory_space<vmem>>, vector<2x4x286xf32>,
    %c0_94 = arith.constant 0 : index
    %c0_95 = arith.constant 0 : index
    %c20 = arith.constant 20 : index
    %45 = vector.load %arg9[%c0_94, %c0_95, %c20] : memref<2x4x324xf32, #tpu.memory_space<vmem>>, vector<2x4x286xf32>
    %c0_96 = arith.constant 0 : index
    %c20_97 = arith.constant 20 : index
    %c0_98 = arith.constant 0 : index
    %46 = vector.load %arg10[%c0_96, %c20_97, %c0_98] : memref<2x36x286xf32, #tpu.memory_space<vmem>>, vector<2x4x286xf32>
    tpu.vector_store %arg10[%c0_96, %c20_97, %c0_98], %45 {strides = array<i32>} : memref<2x36x286xf32, #tpu.memory_space<vmem>>, vector<2x4x286xf32>,
    %c0_99 = arith.constant 0 : index
    %c0_100 = arith.constant 0 : index
    %c36 = arith.constant 36 : index
    %47 = vector.load %arg9[%c0_99, %c0_100, %c36] : memref<2x4x324xf32, #tpu.memory_space<vmem>>, vector<2x4x286xf32>
    %c0_101 = arith.constant 0 : index
    %c24 = arith.constant 24 : index
    %c0_102 = arith.constant 0 : index
    %48 = vector.load %arg10[%c0_101, %c24, %c0_102] : memref<2x36x286xf32, #tpu.memory_space<vmem>>, vector<2x4x286xf32>
    tpu.vector_store %arg10[%c0_101, %c24, %c0_102], %47 {strides = array<i32>} : memref<2x36x286xf32, #tpu.memory_space<vmem>>, vector<2x4x286xf32>,
    %c0_103 = arith.constant 0 : index
    %c0_104 = arith.constant 0 : index
    %c37_105 = arith.constant 37 : index
    %49 = vector.load %arg9[%c0_103, %c0_104, %c37_105] : memref<2x4x324xf32, #tpu.memory_space<vmem>>, vector<2x4x286xf32>
    %c0_106 = arith.constant 0 : index
    %c28 = arith.constant 28 : index
    %c0_107 = arith.constant 0 : index
    %50 = vector.load %arg10[%c0_106, %c28, %c0_107] : memref<2x36x286xf32, #tpu.memory_space<vmem>>, vector<2x4x286xf32>
    tpu.vector_store %arg10[%c0_106, %c28, %c0_107], %49 {strides = array<i32>} : memref<2x36x286xf32, #tpu.memory_space<vmem>>, vector<2x4x286xf32>,
    %c0_108 = arith.constant 0 : index
    %c0_109 = arith.constant 0 : index
    %c38 = arith.constant 38 : index
    %51 = vector.load %arg9[%c0_108, %c0_109, %c38] : memref<2x4x324xf32, #tpu.memory_space<vmem>>, vector<2x4x286xf32>
    %c0_110 = arith.constant 0 : index
    %c32_111 = arith.constant 32 : index
    %c0_112 = arith.constant 0 : index
    %52 = vector.load %arg10[%c0_110, %c32_111, %c0_112] : memref<2x36x286xf32, #tpu.memory_space<vmem>>, vector<2x4x286xf32>
    tpu.vector_store %arg10[%c0_110, %c32_111, %c0_112], %51 {strides = array<i32>} : memref<2x36x286xf32, #tpu.memory_space<vmem>>, vector<2x4x286xf32>,
    %c0_113 = arith.constant 0 : index
    %c0_114 = arith.constant 0 : index
    %53 = vector.load %arg2[%c0_113, %c0_114] : memref<8x36xbf16, #tpu.memory_space<vmem>>, vector<8x36xbf16>
    %c0_115 = arith.constant 0 : index
    %c0_116 = arith.constant 0 : index
    %c0_117 = arith.constant 0 : index
    %54 = vector.load %arg10[%c0_115, %c0_116, %c0_117] : memref<2x36x286xf32, #tpu.memory_space<vmem>>, vector<1x36x286xf32>
    %55 = vector.shape_cast %54 : vector<1x36x286xf32> to vector<36x286xf32>
    %56 = arith.truncf %55 : vector<36x286xf32> to vector<36x286xbf16>
    %cst_118 = arith.constant dense<0.000000e+00> : vector<8x286xf32>
    %57 = tpu.matmul %53, %56, %cst_118 {dimension_numbers = #tpu.dot_dimension_numbers<[1], [0], [0], [1], [0, 0, 1, 1], [], []>} : vector<8x36xbf16>, vector<36x286xbf16>, vector<8x286xf32> -> vector<8x286xf32>
    %c0_119 = arith.constant 0 : index
    %c0_120 = arith.constant 0 : index
    %c0_121 = arith.constant 0 : index
    %58 = vector.load %arg13[%c0_119, %c0_120, %c0_121] : memref<2x8x286xf32, #tpu.memory_space<vmem>>, vector<1x8x286xf32>
    %59 = vector.shape_cast %58 : vector<1x8x286xf32> to vector<8x286xf32>
    %60 = vector.shape_cast %57 : vector<8x286xf32> to vector<1x8x286xf32>
    tpu.vector_store %arg13[%c0_119, %c0_120, %c0_121], %60 {strides = array<i32>} : memref<2x8x286xf32, #tpu.memory_space<vmem>>, vector<1x8x286xf32>,
    %c1_122 = arith.constant 1 : index
    %c0_123 = arith.constant 0 : index
    %c0_124 = arith.constant 0 : index
    %61 = vector.load %arg10[%c1_122, %c0_123, %c0_124] : memref<2x36x286xf32, #tpu.memory_space<vmem>>, vector<1x36x286xf32>
    %62 = vector.shape_cast %61 : vector<1x36x286xf32> to vector<36x286xf32>
    %63 = arith.truncf %62 : vector<36x286xf32> to vector<36x286xbf16>
    %cst_125 = arith.constant dense<0.000000e+00> : vector<8x286xf32>
    %64 = tpu.matmul %53, %63, %cst_125 {dimension_numbers = #tpu.dot_dimension_numbers<[1], [0], [0], [1], [0, 0, 1, 1], [], []>} : vector<8x36xbf16>, vector<36x286xbf16>, vector<8x286xf32> -> vector<8x286xf32>
    %c1_126 = arith.constant 1 : index
    %c0_127 = arith.constant 0 : index
    %c0_128 = arith.constant 0 : index
    %65 = vector.load %arg13[%c1_126, %c0_127, %c0_128] : memref<2x8x286xf32, #tpu.memory_space<vmem>>, vector<1x8x286xf32>
    %66 = vector.shape_cast %65 : vector<1x8x286xf32> to vector<8x286xf32>
    %67 = vector.shape_cast %64 : vector<8x286xf32> to vector<1x8x286xf32>
    tpu.vector_store %arg13[%c1_126, %c0_127, %c0_128], %67 {strides = array<i32>} : memref<2x8x286xf32, #tpu.memory_space<vmem>>, vector<1x8x286xf32>,
    %c0_129 = arith.constant 0 : index
    %c0_130 = arith.constant 0 : index
    %c0_131 = arith.constant 0 : index
    %68 = vector.load %arg13[%c0_129, %c0_130, %c0_131] : memref<2x8x286xf32, #tpu.memory_space<vmem>>, vector<2x8x286xf32>
    %c0_132 = arith.constant 0 : index
    %c0_133 = arith.constant 0 : index
    %c0_134 = arith.constant 0 : index
    %69 = vector.load %arg3[%c0_132, %c0_133, %c0_134] : memref<1x8x1xf32, #tpu.memory_space<vmem>>, vector<1x8x1xf32>
    %c0_135 = arith.constant 0 : index
    %c0_136 = arith.constant 0 : index
    %c0_137 = arith.constant 0 : index
    %70 = vector.load %arg4[%c0_135, %c0_136, %c0_137] : memref<1x8x1xf32, #tpu.memory_space<vmem>>, vector<1x8x1xf32>
    %71 = vector.broadcast %0 : vector<1x1x286xf32> to vector<2x8x286xf32>
    %72 = arith.mulf %68, %71 : vector<2x8x286xf32>
    %cst_138 = arith.constant dense<0.000000e+00> : vector<2x8xf32>
    %73 = vector.multi_reduction <add>, %72, %cst_138 [2] : vector<2x8x286xf32> to vector<2x8xf32>
    %74 = vector.shape_cast %73 : vector<2x8xf32> to vector<2x8x1xf32>
    %cst_139 = arith.constant dense<0.000000e+00> : vector<8x1xf32>
    %75 = vector.multi_reduction <add>, %74, %cst_139 [0] : vector<2x8x1xf32> to vector<8x1xf32>
    %76 = vector.shape_cast %75 : vector<8x1xf32> to vector<1x8x1xf32>
    %77 = arith.mulf %72, %72 : vector<2x8x286xf32>
    %cst_140 = arith.constant dense<0.000000e+00> : vector<2x8xf32>
    %78 = vector.multi_reduction <add>, %77, %cst_140 [2] : vector<2x8x286xf32> to vector<2x8xf32>
    %79 = vector.shape_cast %78 : vector<2x8xf32> to vector<2x8x1xf32>
    %cst_141 = arith.constant dense<0.000000e+00> : vector<8x1xf32>
    %80 = vector.multi_reduction <add>, %79, %cst_141 [0] : vector<2x8x1xf32> to vector<8x1xf32>
    %81 = vector.shape_cast %80 : vector<8x1xf32> to vector<1x8x1xf32>
    %cst_142 = arith.constant 0.001953125 : f32
    %82 = vector.broadcast %cst_142 : f32 to vector<1x8x1xf32>
    %83 = arith.mulf %76, %82 : vector<1x8x1xf32>
    %cst_143 = arith.constant 0.001953125 : f32
    %84 = vector.broadcast %cst_143 : f32 to vector<1x8x1xf32>
    %85 = arith.mulf %81, %84 : vector<1x8x1xf32>
    %86 = arith.mulf %83, %83 : vector<1x8x1xf32>
    %87 = arith.subf %85, %86 : vector<1x8x1xf32>
    %cst_144 = arith.constant 0.000000e+00 : f32
    %88 = vector.broadcast %cst_144 : f32 to vector<1x8x1xf32>
    %89 = arith.maximumf %87, %88 : vector<1x8x1xf32>
    %cst_145 = arith.constant 9.99999974E-6 : f32
    %90 = vector.broadcast %cst_145 : f32 to vector<1x8x1xf32>
    %91 = arith.addf %89, %90 : vector<1x8x1xf32>
    %92 = math.rsqrt %91 : vector<1x8x1xf32>
    %93 = arith.mulf %69, %92 : vector<1x8x1xf32>
    %94 = arith.mulf %83, %93 : vector<1x8x1xf32>
    %95 = arith.subf %70, %94 : vector<1x8x1xf32>
    %96 = vector.broadcast %93 : vector<1x8x1xf32> to vector<2x8x286xf32>
    %97 = arith.mulf %68, %96 : vector<2x8x286xf32>
    %98 = vector.broadcast %95 : vector<1x8x1xf32> to vector<2x8x286xf32>
    %99 = arith.addf %97, %98 : vector<2x8x286xf32>
    %cst_146 = arith.constant 0.000000e+00 : f32
    %100 = vector.broadcast %cst_146 : f32 to vector<2x8x286xf32>
    %101 = arith.maximumf %99, %100 : vector<2x8x286xf32>
    %cst_147 = arith.constant 0.000000e+00 : f32
    %102 = vector.broadcast %cst_147 : f32 to vector<2x8x324xf32>
    %c0_148 = arith.constant 0 : index
    %c0_149 = arith.constant 0 : index
    %c0_150 = arith.constant 0 : index
    %103 = vector.load %arg11[%c0_148, %c0_149, %c0_150] : memref<2x8x324xf32, #tpu.memory_space<vmem>>, vector<2x8x324xf32>
    tpu.vector_store %arg11[%c0_148, %c0_149, %c0_150], %102 {strides = array<i32>} : memref<2x8x324xf32, #tpu.memory_space<vmem>>, vector<2x8x324xf32>,
    %104 = vector.broadcast %0 : vector<1x1x286xf32> to vector<2x8x286xf32>
    %105 = arith.mulf %101, %104 : vector<2x8x286xf32>
    %c0_151 = arith.constant 0 : index
    %c0_152 = arith.constant 0 : index
    %c19_153 = arith.constant 19 : index
    %106 = vector.load %arg11[%c0_151, %c0_152, %c19_153] : memref<2x8x324xf32, #tpu.memory_space<vmem>>, vector<2x8x286xf32>
    tpu.vector_store %arg11[%c0_151, %c0_152, %c19_153], %105 {strides = array<i32>} : memref<2x8x324xf32, #tpu.memory_space<vmem>>, vector<2x8x286xf32>,
    %c0_154 = arith.constant 0 : index
    %c0_155 = arith.constant 0 : index
    %c0_156 = arith.constant 0 : index
    %107 = vector.load %arg11[%c0_154, %c0_155, %c0_156] : memref<2x8x324xf32, #tpu.memory_space<vmem>>, vector<2x8x286xf32>
    %c0_157 = arith.constant 0 : index
    %c0_158 = arith.constant 0 : index
    %c0_159 = arith.constant 0 : index
    %108 = vector.load %arg12[%c0_157, %c0_158, %c0_159] : memref<2x72x286xf32, #tpu.memory_space<vmem>>, vector<2x8x286xf32>
    tpu.vector_store %arg12[%c0_157, %c0_158, %c0_159], %107 {strides = array<i32>} : memref<2x72x286xf32, #tpu.memory_space<vmem>>, vector<2x8x286xf32>,
    %c0_160 = arith.constant 0 : index
    %c0_161 = arith.constant 0 : index
    %c1_162 = arith.constant 1 : index
    %109 = vector.load %arg11[%c0_160, %c0_161, %c1_162] : memref<2x8x324xf32, #tpu.memory_space<vmem>>, vector<2x8x286xf32>
    %c0_163 = arith.constant 0 : index
    %c8_164 = arith.constant 8 : index
    %c0_165 = arith.constant 0 : index
    %110 = vector.load %arg12[%c0_163, %c8_164, %c0_165] : memref<2x72x286xf32, #tpu.memory_space<vmem>>, vector<2x8x286xf32>
    tpu.vector_store %arg12[%c0_163, %c8_164, %c0_165], %109 {strides = array<i32>} : memref<2x72x286xf32, #tpu.memory_space<vmem>>, vector<2x8x286xf32>,
    %c0_166 = arith.constant 0 : index
    %c0_167 = arith.constant 0 : index
    %c2_168 = arith.constant 2 : index
    %111 = vector.load %arg11[%c0_166, %c0_167, %c2_168] : memref<2x8x324xf32, #tpu.memory_space<vmem>>, vector<2x8x286xf32>
    %c0_169 = arith.constant 0 : index
    %c16_170 = arith.constant 16 : index
    %c0_171 = arith.constant 0 : index
    %112 = vector.load %arg12[%c0_169, %c16_170, %c0_171] : memref<2x72x286xf32, #tpu.memory_space<vmem>>, vector<2x8x286xf32>
    tpu.vector_store %arg12[%c0_169, %c16_170, %c0_171], %111 {strides = array<i32>} : memref<2x72x286xf32, #tpu.memory_space<vmem>>, vector<2x8x286xf32>,
    %c0_172 = arith.constant 0 : index
    %c0_173 = arith.constant 0 : index
    %c18_174 = arith.constant 18 : index
    %113 = vector.load %arg11[%c0_172, %c0_173, %c18_174] : memref<2x8x324xf32, #tpu.memory_space<vmem>>, vector<2x8x286xf32>
    %c0_175 = arith.constant 0 : index
    %c24_176 = arith.constant 24 : index
    %c0_177 = arith.constant 0 : index
    %114 = vector.load %arg12[%c0_175, %c24_176, %c0_177] : memref<2x72x286xf32, #tpu.memory_space<vmem>>, vector<2x8x286xf32>
    tpu.vector_store %arg12[%c0_175, %c24_176, %c0_177], %113 {strides = array<i32>} : memref<2x72x286xf32, #tpu.memory_space<vmem>>, vector<2x8x286xf32>,
    %c0_178 = arith.constant 0 : index
    %c0_179 = arith.constant 0 : index
    %c19_180 = arith.constant 19 : index
    %115 = vector.load %arg11[%c0_178, %c0_179, %c19_180] : memref<2x8x324xf32, #tpu.memory_space<vmem>>, vector<2x8x286xf32>
    %c0_181 = arith.constant 0 : index
    %c32_182 = arith.constant 32 : index
    %c0_183 = arith.constant 0 : index
    %116 = vector.load %arg12[%c0_181, %c32_182, %c0_183] : memref<2x72x286xf32, #tpu.memory_space<vmem>>, vector<2x8x286xf32>
    tpu.vector_store %arg12[%c0_181, %c32_182, %c0_183], %115 {strides = array<i32>} : memref<2x72x286xf32, #tpu.memory_space<vmem>>, vector<2x8x286xf32>,
    %c0_184 = arith.constant 0 : index
    %c0_185 = arith.constant 0 : index
    %c20_186 = arith.constant 20 : index
    %117 = vector.load %arg11[%c0_184, %c0_185, %c20_186] : memref<2x8x324xf32, #tpu.memory_space<vmem>>, vector<2x8x286xf32>
    %c0_187 = arith.constant 0 : index
    %c40 = arith.constant 40 : index
    %c0_188 = arith.constant 0 : index
    %118 = vector.load %arg12[%c0_187, %c40, %c0_188] : memref<2x72x286xf32, #tpu.memory_space<vmem>>, vector<2x8x286xf32>
    tpu.vector_store %arg12[%c0_187, %c40, %c0_188], %117 {strides = array<i32>} : memref<2x72x286xf32, #tpu.memory_space<vmem>>, vector<2x8x286xf32>,
    %c0_189 = arith.constant 0 : index
    %c0_190 = arith.constant 0 : index
    %c36_191 = arith.constant 36 : index
    %119 = vector.load %arg11[%c0_189, %c0_190, %c36_191] : memref<2x8x324xf32, #tpu.memory_space<vmem>>, vector<2x8x286xf32>
    %c0_192 = arith.constant 0 : index
    %c48_193 = arith.constant 48 : index
    %c0_194 = arith.constant 0 : index
    %120 = vector.load %arg12[%c0_192, %c48_193, %c0_194] : memref<2x72x286xf32, #tpu.memory_space<vmem>>, vector<2x8x286xf32>
    tpu.vector_store %arg12[%c0_192, %c48_193, %c0_194], %119 {strides = array<i32>} : memref<2x72x286xf32, #tpu.memory_space<vmem>>, vector<2x8x286xf32>,
    %c0_195 = arith.constant 0 : index
    %c0_196 = arith.constant 0 : index
    %c37_197 = arith.constant 37 : index
    %121 = vector.load %arg11[%c0_195, %c0_196, %c37_197] : memref<2x8x324xf32, #tpu.memory_space<vmem>>, vector<2x8x286xf32>
    %c0_198 = arith.constant 0 : index
    %c56 = arith.constant 56 : index
    %c0_199 = arith.constant 0 : index
    %122 = vector.load %arg12[%c0_198, %c56, %c0_199] : memref<2x72x286xf32, #tpu.memory_space<vmem>>, vector<2x8x286xf32>
    tpu.vector_store %arg12[%c0_198, %c56, %c0_199], %121 {strides = array<i32>} : memref<2x72x286xf32, #tpu.memory_space<vmem>>, vector<2x8x286xf32>,
    %c0_200 = arith.constant 0 : index
    %c0_201 = arith.constant 0 : index
    %c38_202 = arith.constant 38 : index
    %123 = vector.load %arg11[%c0_200, %c0_201, %c38_202] : memref<2x8x324xf32, #tpu.memory_space<vmem>>, vector<2x8x286xf32>
    %c0_203 = arith.constant 0 : index
    %c64_204 = arith.constant 64 : index
    %c0_205 = arith.constant 0 : index
    %124 = vector.load %arg12[%c0_203, %c64_204, %c0_205] : memref<2x72x286xf32, #tpu.memory_space<vmem>>, vector<2x8x286xf32>
    tpu.vector_store %arg12[%c0_203, %c64_204, %c0_205], %123 {strides = array<i32>} : memref<2x72x286xf32, #tpu.memory_space<vmem>>, vector<2x8x286xf32>,
    %c0_206 = arith.constant 0 : index
    %c0_207 = arith.constant 0 : index
    %125 = vector.load %arg5[%c0_206, %c0_207] : memref<8x72xbf16, #tpu.memory_space<vmem>>, vector<8x72xbf16>
    %c0_208 = arith.constant 0 : index
    %c0_209 = arith.constant 0 : index
    %c0_210 = arith.constant 0 : index
    %126 = vector.load %arg12[%c0_208, %c0_209, %c0_210] : memref<2x72x286xf32, #tpu.memory_space<vmem>>, vector<1x72x286xf32>
    %127 = vector.shape_cast %126 : vector<1x72x286xf32> to vector<72x286xf32>
    %128 = arith.truncf %127 : vector<72x286xf32> to vector<72x286xbf16>
    %cst_211 = arith.constant dense<0.000000e+00> : vector<8x286xf32>
    %129 = tpu.matmul %125, %128, %cst_211 {dimension_numbers = #tpu.dot_dimension_numbers<[1], [0], [0], [1], [0, 0, 1, 1], [], []>} : vector<8x72xbf16>, vector<72x286xbf16>, vector<8x286xf32> -> vector<8x286xf32>
    %c0_212 = arith.constant 0 : index
    %c0_213 = arith.constant 0 : index
    %c0_214 = arith.constant 0 : index
    %130 = vector.load %arg13[%c0_212, %c0_213, %c0_214] : memref<2x8x286xf32, #tpu.memory_space<vmem>>, vector<1x8x286xf32>
    %131 = vector.shape_cast %130 : vector<1x8x286xf32> to vector<8x286xf32>
    %132 = vector.shape_cast %129 : vector<8x286xf32> to vector<1x8x286xf32>
    tpu.vector_store %arg13[%c0_212, %c0_213, %c0_214], %132 {strides = array<i32>} : memref<2x8x286xf32, #tpu.memory_space<vmem>>, vector<1x8x286xf32>,
    %c1_215 = arith.constant 1 : index
    %c0_216 = arith.constant 0 : index
    %c0_217 = arith.constant 0 : index
    %133 = vector.load %arg12[%c1_215, %c0_216, %c0_217] : memref<2x72x286xf32, #tpu.memory_space<vmem>>, vector<1x72x286xf32>
    %134 = vector.shape_cast %133 : vector<1x72x286xf32> to vector<72x286xf32>
    %135 = arith.truncf %134 : vector<72x286xf32> to vector<72x286xbf16>
    %cst_218 = arith.constant dense<0.000000e+00> : vector<8x286xf32>
    %136 = tpu.matmul %125, %135, %cst_218 {dimension_numbers = #tpu.dot_dimension_numbers<[1], [0], [0], [1], [0, 0, 1, 1], [], []>} : vector<8x72xbf16>, vector<72x286xbf16>, vector<8x286xf32> -> vector<8x286xf32>
    %c1_219 = arith.constant 1 : index
    %c0_220 = arith.constant 0 : index
    %c0_221 = arith.constant 0 : index
    %137 = vector.load %arg13[%c1_219, %c0_220, %c0_221] : memref<2x8x286xf32, #tpu.memory_space<vmem>>, vector<1x8x286xf32>
    %138 = vector.shape_cast %137 : vector<1x8x286xf32> to vector<8x286xf32>
    %139 = vector.shape_cast %136 : vector<8x286xf32> to vector<1x8x286xf32>
    tpu.vector_store %arg13[%c1_219, %c0_220, %c0_221], %139 {strides = array<i32>} : memref<2x8x286xf32, #tpu.memory_space<vmem>>, vector<1x8x286xf32>,
    %c0_222 = arith.constant 0 : index
    %c0_223 = arith.constant 0 : index
    %c0_224 = arith.constant 0 : index
    %140 = vector.load %arg13[%c0_222, %c0_223, %c0_224] : memref<2x8x286xf32, #tpu.memory_space<vmem>>, vector<2x8x286xf32>
    %c0_225 = arith.constant 0 : index
    %c0_226 = arith.constant 0 : index
    %c0_227 = arith.constant 0 : index
    %141 = vector.load %arg6[%c0_225, %c0_226, %c0_227] : memref<1x8x1xf32, #tpu.memory_space<vmem>>, vector<1x8x1xf32>
    %c0_228 = arith.constant 0 : index
    %c0_229 = arith.constant 0 : index
    %c0_230 = arith.constant 0 : index
    %142 = vector.load %arg7[%c0_228, %c0_229, %c0_230] : memref<1x8x1xf32, #tpu.memory_space<vmem>>, vector<1x8x1xf32>
    %143 = vector.broadcast %0 : vector<1x1x286xf32> to vector<2x8x286xf32>
    %144 = arith.mulf %140, %143 : vector<2x8x286xf32>
    %cst_231 = arith.constant dense<0.000000e+00> : vector<2x8xf32>
    %145 = vector.multi_reduction <add>, %144, %cst_231 [2] : vector<2x8x286xf32> to vector<2x8xf32>
    %146 = vector.shape_cast %145 : vector<2x8xf32> to vector<2x8x1xf32>
    %cst_232 = arith.constant dense<0.000000e+00> : vector<8x1xf32>
    %147 = vector.multi_reduction <add>, %146, %cst_232 [0] : vector<2x8x1xf32> to vector<8x1xf32>
    %148 = vector.shape_cast %147 : vector<8x1xf32> to vector<1x8x1xf32>
    %149 = arith.mulf %144, %144 : vector<2x8x286xf32>
    %cst_233 = arith.constant dense<0.000000e+00> : vector<2x8xf32>
    %150 = vector.multi_reduction <add>, %149, %cst_233 [2] : vector<2x8x286xf32> to vector<2x8xf32>
    %151 = vector.shape_cast %150 : vector<2x8xf32> to vector<2x8x1xf32>
    %cst_234 = arith.constant dense<0.000000e+00> : vector<8x1xf32>
    %152 = vector.multi_reduction <add>, %151, %cst_234 [0] : vector<2x8x1xf32> to vector<8x1xf32>
    %153 = vector.shape_cast %152 : vector<8x1xf32> to vector<1x8x1xf32>
    %cst_235 = arith.constant 0.001953125 : f32
    %154 = vector.broadcast %cst_235 : f32 to vector<1x8x1xf32>
    %155 = arith.mulf %148, %154 : vector<1x8x1xf32>
    %cst_236 = arith.constant 0.001953125 : f32
    %156 = vector.broadcast %cst_236 : f32 to vector<1x8x1xf32>
    %157 = arith.mulf %153, %156 : vector<1x8x1xf32>
    %158 = arith.mulf %155, %155 : vector<1x8x1xf32>
    %159 = arith.subf %157, %158 : vector<1x8x1xf32>
    %cst_237 = arith.constant 0.000000e+00 : f32
    %160 = vector.broadcast %cst_237 : f32 to vector<1x8x1xf32>
    %161 = arith.maximumf %159, %160 : vector<1x8x1xf32>
    %cst_238 = arith.constant 9.99999974E-6 : f32
    %162 = vector.broadcast %cst_238 : f32 to vector<1x8x1xf32>
    %163 = arith.addf %161, %162 : vector<1x8x1xf32>
    %164 = math.rsqrt %163 : vector<1x8x1xf32>
    %165 = arith.mulf %141, %164 : vector<1x8x1xf32>
    %166 = arith.mulf %155, %165 : vector<1x8x1xf32>
    %167 = arith.subf %142, %166 : vector<1x8x1xf32>
    %168 = vector.broadcast %165 : vector<1x8x1xf32> to vector<2x8x286xf32>
    %169 = arith.mulf %140, %168 : vector<2x8x286xf32>
    %170 = vector.broadcast %167 : vector<1x8x1xf32> to vector<2x8x286xf32>
    %171 = arith.addf %169, %170 : vector<2x8x286xf32>
    %cst_239 = arith.constant 0.000000e+00 : f32
    %172 = vector.broadcast %cst_239 : f32 to vector<2x8x286xf32>
    %173 = arith.maximumf %171, %172 : vector<2x8x286xf32>
    %174 = vector.extract_strided_slice %173 {offsets = [0, 0, 0], sizes = [2, 8, 16], strides = [1, 1, 1]} : vector<2x8x286xf32> to vector<2x8x16xf32>
    %c0_240 = arith.constant 0 : index
    %c0_241 = arith.constant 0 : index
    %c0_242 = arith.constant 0 : index
    %175 = vector.load %arg8[%c0_240, %c0_241, %c0_242] : memref<2x8x256xf32, #tpu.memory_space<vmem>>, vector<2x8x16xf32>
    tpu.vector_store %arg8[%c0_240, %c0_241, %c0_242], %174 {strides = array<i32>} : memref<2x8x256xf32, #tpu.memory_space<vmem>>, vector<2x8x16xf32>,
    %176 = vector.extract_strided_slice %173 {offsets = [0, 0, 18], sizes = [2, 8, 16], strides = [1, 1, 1]} : vector<2x8x286xf32> to vector<2x8x16xf32>
    %c0_243 = arith.constant 0 : index
    %c0_244 = arith.constant 0 : index
    %c16_245 = arith.constant 16 : index
    %177 = vector.load %arg8[%c0_243, %c0_244, %c16_245] : memref<2x8x256xf32, #tpu.memory_space<vmem>>, vector<2x8x16xf32>
    tpu.vector_store %arg8[%c0_243, %c0_244, %c16_245], %176 {strides = array<i32>} : memref<2x8x256xf32, #tpu.memory_space<vmem>>, vector<2x8x16xf32>,
    %178 = vector.extract_strided_slice %173 {offsets = [0, 0, 36], sizes = [2, 8, 16], strides = [1, 1, 1]} : vector<2x8x286xf32> to vector<2x8x16xf32>
    %c0_246 = arith.constant 0 : index
    %c0_247 = arith.constant 0 : index
    %c32_248 = arith.constant 32 : index
    %179 = vector.load %arg8[%c0_246, %c0_247, %c32_248] : memref<2x8x256xf32, #tpu.memory_space<vmem>>, vector<2x8x16xf32>
    tpu.vector_store %arg8[%c0_246, %c0_247, %c32_248], %178 {strides = array<i32>} : memref<2x8x256xf32, #tpu.memory_space<vmem>>, vector<2x8x16xf32>,
    %180 = vector.extract_strided_slice %173 {offsets = [0, 0, 54], sizes = [2, 8, 16], strides = [1, 1, 1]} : vector<2x8x286xf32> to vector<2x8x16xf32>
    %c0_249 = arith.constant 0 : index
    %c0_250 = arith.constant 0 : index
    %c48_251 = arith.constant 48 : index
    %181 = vector.load %arg8[%c0_249, %c0_250, %c48_251] : memref<2x8x256xf32, #tpu.memory_space<vmem>>, vector<2x8x16xf32>
    tpu.vector_store %arg8[%c0_249, %c0_250, %c48_251], %180 {strides = array<i32>} : memref<2x8x256xf32, #tpu.memory_space<vmem>>, vector<2x8x16xf32>,
    %182 = vector.extract_strided_slice %173 {offsets = [0, 0, 72], sizes = [2, 8, 16], strides = [1, 1, 1]} : vector<2x8x286xf32> to vector<2x8x16xf32>
    %c0_252 = arith.constant 0 : index
    %c0_253 = arith.constant 0 : index
    %c64_254 = arith.constant 64 : index
    %183 = vector.load %arg8[%c0_252, %c0_253, %c64_254] : memref<2x8x256xf32, #tpu.memory_space<vmem>>, vector<2x8x16xf32>
    tpu.vector_store %arg8[%c0_252, %c0_253, %c64_254], %182 {strides = array<i32>} : memref<2x8x256xf32, #tpu.memory_space<vmem>>, vector<2x8x16xf32>,
    %184 = vector.extract_strided_slice %173 {offsets = [0, 0, 90], sizes = [2, 8, 16], strides = [1, 1, 1]} : vector<2x8x286xf32> to vector<2x8x16xf32>
    %c0_255 = arith.constant 0 : index
    %c0_256 = arith.constant 0 : index
    %c80_257 = arith.constant 80 : index
    %185 = vector.load %arg8[%c0_255, %c0_256, %c80_257] : memref<2x8x256xf32, #tpu.memory_space<vmem>>, vector<2x8x16xf32>
    tpu.vector_store %arg8[%c0_255, %c0_256, %c80_257], %184 {strides = array<i32>} : memref<2x8x256xf32, #tpu.memory_space<vmem>>, vector<2x8x16xf32>,
    %186 = vector.extract_strided_slice %173 {offsets = [0, 0, 108], sizes = [2, 8, 16], strides = [1, 1, 1]} : vector<2x8x286xf32> to vector<2x8x16xf32>
    %c0_258 = arith.constant 0 : index
    %c0_259 = arith.constant 0 : index
    %c96_260 = arith.constant 96 : index
    %187 = vector.load %arg8[%c0_258, %c0_259, %c96_260] : memref<2x8x256xf32, #tpu.memory_space<vmem>>, vector<2x8x16xf32>
    tpu.vector_store %arg8[%c0_258, %c0_259, %c96_260], %186 {strides = array<i32>} : memref<2x8x256xf32, #tpu.memory_space<vmem>>, vector<2x8x16xf32>,
    %188 = vector.extract_strided_slice %173 {offsets = [0, 0, 126], sizes = [2, 8, 16], strides = [1, 1, 1]} : vector<2x8x286xf32> to vector<2x8x16xf32>
    %c0_261 = arith.constant 0 : index
    %c0_262 = arith.constant 0 : index
    %c112_263 = arith.constant 112 : index
    %189 = vector.load %arg8[%c0_261, %c0_262, %c112_263] : memref<2x8x256xf32, #tpu.memory_space<vmem>>, vector<2x8x16xf32>
    tpu.vector_store %arg8[%c0_261, %c0_262, %c112_263], %188 {strides = array<i32>} : memref<2x8x256xf32, #tpu.memory_space<vmem>>, vector<2x8x16xf32>,
    %190 = vector.extract_strided_slice %173 {offsets = [0, 0, 144], sizes = [2, 8, 16], strides = [1, 1, 1]} : vector<2x8x286xf32> to vector<2x8x16xf32>
    %c0_264 = arith.constant 0 : index
    %c0_265 = arith.constant 0 : index
    %c128_266 = arith.constant 128 : index
    %191 = vector.load %arg8[%c0_264, %c0_265, %c128_266] : memref<2x8x256xf32, #tpu.memory_space<vmem>>, vector<2x8x16xf32>
    tpu.vector_store %arg8[%c0_264, %c0_265, %c128_266], %190 {strides = array<i32>} : memref<2x8x256xf32, #tpu.memory_space<vmem>>, vector<2x8x16xf32>,
    %192 = vector.extract_strided_slice %173 {offsets = [0, 0, 162], sizes = [2, 8, 16], strides = [1, 1, 1]} : vector<2x8x286xf32> to vector<2x8x16xf32>
    %c0_267 = arith.constant 0 : index
    %c0_268 = arith.constant 0 : index
    %c144_269 = arith.constant 144 : index
    %193 = vector.load %arg8[%c0_267, %c0_268, %c144_269] : memref<2x8x256xf32, #tpu.memory_space<vmem>>, vector<2x8x16xf32>
    tpu.vector_store %arg8[%c0_267, %c0_268, %c144_269], %192 {strides = array<i32>} : memref<2x8x256xf32, #tpu.memory_space<vmem>>, vector<2x8x16xf32>,
    %194 = vector.extract_strided_slice %173 {offsets = [0, 0, 180], sizes = [2, 8, 16], strides = [1, 1, 1]} : vector<2x8x286xf32> to vector<2x8x16xf32>
    %c0_270 = arith.constant 0 : index
    %c0_271 = arith.constant 0 : index
    %c160_272 = arith.constant 160 : index
    %195 = vector.load %arg8[%c0_270, %c0_271, %c160_272] : memref<2x8x256xf32, #tpu.memory_space<vmem>>, vector<2x8x16xf32>
    tpu.vector_store %arg8[%c0_270, %c0_271, %c160_272], %194 {strides = array<i32>} : memref<2x8x256xf32, #tpu.memory_space<vmem>>, vector<2x8x16xf32>,
    %196 = vector.extract_strided_slice %173 {offsets = [0, 0, 198], sizes = [2, 8, 16], strides = [1, 1, 1]} : vector<2x8x286xf32> to vector<2x8x16xf32>
    %c0_273 = arith.constant 0 : index
    %c0_274 = arith.constant 0 : index
    %c176_275 = arith.constant 176 : index
    %197 = vector.load %arg8[%c0_273, %c0_274, %c176_275] : memref<2x8x256xf32, #tpu.memory_space<vmem>>, vector<2x8x16xf32>
    tpu.vector_store %arg8[%c0_273, %c0_274, %c176_275], %196 {strides = array<i32>} : memref<2x8x256xf32, #tpu.memory_space<vmem>>, vector<2x8x16xf32>,
    %198 = vector.extract_strided_slice %173 {offsets = [0, 0, 216], sizes = [2, 8, 16], strides = [1, 1, 1]} : vector<2x8x286xf32> to vector<2x8x16xf32>
    %c0_276 = arith.constant 0 : index
    %c0_277 = arith.constant 0 : index
    %c192_278 = arith.constant 192 : index
    %199 = vector.load %arg8[%c0_276, %c0_277, %c192_278] : memref<2x8x256xf32, #tpu.memory_space<vmem>>, vector<2x8x16xf32>
    tpu.vector_store %arg8[%c0_276, %c0_277, %c192_278], %198 {strides = array<i32>} : memref<2x8x256xf32, #tpu.memory_space<vmem>>, vector<2x8x16xf32>,
    %200 = vector.extract_strided_slice %173 {offsets = [0, 0, 234], sizes = [2, 8, 16], strides = [1, 1, 1]} : vector<2x8x286xf32> to vector<2x8x16xf32>
    %c0_279 = arith.constant 0 : index
    %c0_280 = arith.constant 0 : index
    %c208_281 = arith.constant 208 : index
    %201 = vector.load %arg8[%c0_279, %c0_280, %c208_281] : memref<2x8x256xf32, #tpu.memory_space<vmem>>, vector<2x8x16xf32>
    tpu.vector_store %arg8[%c0_279, %c0_280, %c208_281], %200 {strides = array<i32>} : memref<2x8x256xf32, #tpu.memory_space<vmem>>, vector<2x8x16xf32>,
    %202 = vector.extract_strided_slice %173 {offsets = [0, 0, 252], sizes = [2, 8, 16], strides = [1, 1, 1]} : vector<2x8x286xf32> to vector<2x8x16xf32>
    %c0_282 = arith.constant 0 : index
    %c0_283 = arith.constant 0 : index
    %c224_284 = arith.constant 224 : index
    %203 = vector.load %arg8[%c0_282, %c0_283, %c224_284] : memref<2x8x256xf32, #tpu.memory_space<vmem>>, vector<2x8x16xf32>
    tpu.vector_store %arg8[%c0_282, %c0_283, %c224_284], %202 {strides = array<i32>} : memref<2x8x256xf32, #tpu.memory_space<vmem>>, vector<2x8x16xf32>,
    %204 = vector.extract_strided_slice %173 {offsets = [0, 0, 270], sizes = [2, 8, 16], strides = [1, 1, 1]} : vector<2x8x286xf32> to vector<2x8x16xf32>
    %c0_285 = arith.constant 0 : index
    %c0_286 = arith.constant 0 : index
    %c240_287 = arith.constant 240 : index
    %205 = vector.load %arg8[%c0_285, %c0_286, %c240_287] : memref<2x8x256xf32, #tpu.memory_space<vmem>>, vector<2x8x16xf32>
    tpu.vector_store %arg8[%c0_285, %c0_286, %c240_287], %204 {strides = array<i32>} : memref<2x8x256xf32, #tpu.memory_space<vmem>>, vector<2x8x16xf32>,
    return
  }
}

</mosaic_0001>

<llo_original>
// kernel: input_conv.1
$region0: #{input_conv.1}
  #allocation0 [shape = 'u32[]', space=smem, size = 0x4, offset = 0x4, fixed_abs, tag = 'smem constant byte address 0x4 - core index']
  #allocation1 [shape = 'u32[144,128]{1,0:T(1,128)}', space=vmem, size = 0x12000, scoped, tag = 'internal scratch']
  #allocation2 [shape = 'f32[2,4,324]{2,1,0:T(4,128)}', space=vmem, size = 0x3000, scoped, tag = 'scratch operand']
  #allocation3 [shape = 'f32[2,36,286]{2,1,0:T(8,128)}', space=vmem, size = 0x1e000, scoped, tag = 'scratch operand']
  #allocation4 [shape = 'f32[2,8,324]{2,1,0:T(8,128)}', space=vmem, size = 0x6000, scoped, tag = 'scratch operand']
  #allocation5 [shape = 'f32[2,72,286]{2,1,0:T(8,128)}', space=vmem, size = 0x36000, scoped, tag = 'scratch operand']
  #allocation6 [shape = 'f32[2,8,286]{2,1,0:T(8,128)}', space=vmem, size = 0x6000, scoped, tag = 'scratch operand']
  %s0 = inlined_call_operand.hbm [shape: f32[2,4,256], index: 0, kind: input, shape index: {}]
  %s1 = inlined_call_operand.hbm [shape: f32[1,1,286], index: 1, kind: input, shape index: {}]
  %s2 = inlined_call_operand.hbm [shape: bf16[8,36], index: 2, kind: input, shape index: {}]
  %s3 = inlined_call_operand.hbm [shape: f32[1,8,1], index: 3, kind: input, shape index: {}]
  %s4 = inlined_call_operand.hbm [shape: f32[1,8,1], index: 4, kind: input, shape index: {}]
  %s5 = inlined_call_operand.hbm [shape: bf16[8,72], index: 5, kind: input, shape index: {}]
  %s6 = inlined_call_operand.hbm [shape: f32[1,8,1], index: 6, kind: input, shape index: {}]
  %s7 = inlined_call_operand.hbm [shape: f32[1,8,1], index: 7, kind: input, shape index: {}]
  %s8 = inlined_call_operand.hbm [shape: f32[2,8,256], index: 8, kind: output, shape index: {}]
  %s9 = sld [smem:[#allocation0]]
  $region74: #{input_conv.1} parent=0
    _
  %s11 = ssub.s32 1, %s9
  %s12 = scalar_select 0, %s11, %s9
  $region1: #{input_conv.1} parent=0
    #allocation7 [shape = 'u8[8192]{0}', space=vmem, size = 0x2000, scoped, tag = 'input window, operand 0, single buffered']
    #allocation8 [shape = 's32[1]{0}', space=sflag, size = 0x4, scoped, tag = 'scoped memory for input_conv.1']
    #allocation9 [shape = 's32[1]{0}', space=sflag, size = 0x4, scoped, tag = 'scoped memory for input_conv.1']
    #allocation10 [shape = 'u8[1536]{0}', space=vmem, size = 0x800, scoped, tag = 'input window, operand 1, single buffered']
    #allocation11 [shape = 's32[1]{0}', space=sflag, size = 0x4, scoped, tag = 'scoped memory for input_conv.1']
    #allocation12 [shape = 'u8[2048]{0}', space=vmem, size = 0x800, scoped, tag = 'input window, operand 2, single buffered']
    #allocation13 [shape = 'u8[4096]{0}', space=vmem, size = 0x1000, scoped, tag = 'input window, operand 3, single buffered']
    #allocation14 [shape = 's32[1]{0}', space=sflag, size = 0x4, scoped, tag = 'scoped memory for input_conv.1']
    #allocation15 [shape = 'u8[4096]{0}', space=vmem, size = 0x1000, scoped, tag = 'input window, operand 4, single buffered']
    #allocation16 [shape = 'u8[2048]{0}', space=vmem, size = 0x800, scoped, tag = 'input window, operand 5, single buffered']
    #allocation17 [shape = 's32[1]{0}', space=sflag, size = 0x4, scoped, tag = 'scoped memory for input_conv.1']
    #allocation18 [shape = 'u8[4096]{0}', space=vmem, size = 0x1000, scoped, tag = 'input window, operand 6, single buffered']
    #allocation19 [shape = 'u8[4096]{0}', space=vmem, size = 0x1000, scoped, tag = 'input window, operand 7, single buffered']
    #allocation20 [shape = 's32[1]{0}', space=sflag, size = 0x4, scoped, tag = 'scoped memory for input_conv.1']
    #allocation21 [shape = 'u8[16384]{0}', space=vmem, size = 0x4000, scoped, tag = 'output window, operand 0, single buffered']
    %13 = vsyncpa [#allocation8], 0
    %14 = vsyncpa [#allocation11], 0
    %15 = vsyncpa [#allocation14], 0
    %16 = vsyncpa [#allocation17], 0
    %17 = vsyncpa [#allocation20], 0
    %18 = vsyncpa [#allocation9], 0
    // Predicated region
    $region2: #{input_conv.1} parent=1 // pred_check
      _
    $region3: #{input_conv.1} parent=1 // pred_check_branch
      %20 = sbr.rel (0) target = $region5
    $region4: #{input_conv.1} parent=1 // pred_region
      %s22 = ssub.s32 256, 256
      %23 = vsyncadd [#allocation8], %s22
      %s24 = sshll.u32 [#allocation7], 4
      %s25 = int_to_ptr.vmem [resolvable:$true] %s24
      %30 = dma.hbm_to_vmem [thread:$0]  %s0, 256, %s25, [#allocation8], 128, 128, 8
    $region5: #{input_conv.1} parent=1 // pred_fallthru
      _
    // Predicated region
    $region6: #{input_conv.1} parent=1 // pred_check
      _
    $region7: #{input_conv.1} parent=1 // pred_check_branch
      %32 = sbr.rel (0) target = $region9
    $region8: #{input_conv.1} parent=1 // pred_region
      %s34 = ssub.s32 48, 48
      %35 = vsyncadd [#allocation11], %s34
      %s37 = sshll.u32 [#allocation10], 4
      %s38 = int_to_ptr.vmem [resolvable:$true] %s37
      %40 = dma.hbm_to_vmem [thread:$0]  %s1, 48, %s38, [#allocation11]
    $region9: #{input_conv.1} parent=1 // pred_fallthru
      _
    // Predicated region
    $region10: #{input_conv.1} parent=1 // pred_check
      _
    $region11: #{input_conv.1} parent=1 // pred_check_branch
      %42 = sbr.rel (0) target = $region13
    $region12: #{input_conv.1} parent=1 // pred_region
      %s44 = ssub.s32 64, 64
      %45 = vsyncadd [#allocation11], %s44
      %s47 = sshll.u32 [#allocation12], 4
      %s48 = int_to_ptr.vmem [resolvable:$true] %s47
      %50 = dma.hbm_to_vmem [thread:$0]  %s2, 64, %s48, [#allocation11]
    $region13: #{input_conv.1} parent=1 // pred_fallthru
      _
    // Predicated region
    $region14: #{input_conv.1} parent=1 // pred_check
      _
    $region15: #{input_conv.1} parent=1 // pred_check_branch
      %52 = sbr.rel (0) target = $region17
    $region16: #{input_conv.1} parent=1 // pred_region
      %s54 = ssub.s32 128, 128
      %55 = vsyncadd [#allocation14], %s54
      %s57 = sshll.u32 [#allocation13], 4
      %s58 = int_to_ptr.vmem [resolvable:$true] %s57
      %60 = dma.hbm_to_vmem [thread:$0]  %s3, 128, %s58, [#allocation14]
    $region17: #{input_conv.1} parent=1 // pred_fallthru
      _
    // Predicated region
    $region18: #{input_conv.1} parent=1 // pred_check
      _
    $region19: #{input_conv.1} parent=1 // pred_check_branch
      %62 = sbr.rel (0) target = $region21
    $region20: #{input_conv.1} parent=1 // pred_region
      %s64 = ssub.s32 128, 128
      %65 = vsyncadd [#allocation14], %s64
      %s67 = sshll.u32 [#allocation15], 4
      %s68 = int_to_ptr.vmem [resolvable:$true] %s67
      %70 = dma.hbm_to_vmem [thread:$0]  %s4, 128, %s68, [#allocation14]
    $region21: #{input_conv.1} parent=1 // pred_fallthru
      _
    // Predicated region
    $region22: #{input_conv.1} parent=1 // pred_check
      _
    $region23: #{input_conv.1} parent=1 // pred_check_branch
      %72 = sbr.rel (0) target = $region25
    $region24: #{input_conv.1} parent=1 // pred_region
      %s74 = ssub.s32 64, 64
      %75 = vsyncadd [#allocation17], %s74
      %s77 = sshll.u32 [#allocation16], 4
      %s78 = int_to_ptr.vmem [resolvable:$true] %s77
      %80 = dma.hbm_to_vmem [thread:$0]  %s5, 64, %s78, [#allocation17]
    $region25: #{input_conv.1} parent=1 // pred_fallthru
      _
    // Predicated region
    $region26: #{input_conv.1} parent=1 // pred_check
      _
    $region27: #{input_conv.1} parent=1 // pred_check_branch
      %82 = sbr.rel (0) target = $region29
    $region28: #{input_conv.1} parent=1 // pred_region
      %s84 = ssub.s32 128, 128
      %85 = vsyncadd [#allocation17], %s84
      %s87 = sshll.u32 [#allocation18], 4
      %s88 = int_to_ptr.vmem [resolvable:$true] %s87
      %90 = dma.hbm_to_vmem [thread:$0]  %s6, 128, %s88, [#allocation17]
    $region29: #{input_conv.1} parent=1 // pred_fallthru
      _
    // Predicated region
    $region30: #{input_conv.1} parent=1 // pred_check
      _
    $region31: #{input_conv.1} parent=1 // pred_check_branch
      %92 = sbr.rel (0) target = $region33
    $region32: #{input_conv.1} parent=1 // pred_region
      %s94 = ssub.s32 128, 128
      %95 = vsyncadd [#allocation20], %s94
      %s97 = sshll.u32 [#allocation19], 4
      %s98 = int_to_ptr.vmem [resolvable:$true] %s97
      %100 = dma.hbm_to_vmem [thread:$0]  %s7, 128, %s98, [#allocation20]
    $region33: #{input_conv.1} parent=1 // pred_fallthru
      _
    // Predicated region
    $region34: #{input_conv.1} parent=1 // pred_check
      _
    $region35: #{input_conv.1} parent=1 // pred_check_branch
      %102 = sbr.rel (0) target = $region37
    $region36: #{input_conv.1} parent=1 // pred_region
      %103 = dma.done [#allocation8], 256
    $region37: #{input_conv.1} parent=1 // pred_fallthru
      _
    // Predicated region
    $region38: #{input_conv.1} parent=1 // pred_check
      _
    $region39: #{input_conv.1} parent=1 // pred_check_branch
      %105 = sbr.rel (0) target = $region41
    $region40: #{input_conv.1} parent=1 // pred_region
      %106 = dma.done [#allocation11], 48
    $region41: #{input_conv.1} parent=1 // pred_fallthru
      _
    // Predicated region
    $region42: #{input_conv.1} parent=1 // pred_check
      _
    $region43: #{input_conv.1} parent=1 // pred_check_branch
      %108 = sbr.rel (0) target = $region45
    $region44: #{input_conv.1} parent=1 // pred_region
      %109 = dma.done [#allocation11], 64
    $region45: #{input_conv.1} parent=1 // pred_fallthru
      _
    // Predicated region
    $region46: #{input_conv.1} parent=1 // pred_check
      _
    $region47: #{input_conv.1} parent=1 // pred_check_branch
      %111 = sbr.rel (0) target = $region49
    $region48: #{input_conv.1} parent=1 // pred_region
      %112 = dma.done [#allocation14], 128
    $region49: #{input_conv.1} parent=1 // pred_fallthru
      _
    // Predicated region
    $region50: #{input_conv.1} parent=1 // pred_check
      _
    $region51: #{input_conv.1} parent=1 // pred_check_branch
      %114 = sbr.rel (0) target = $region53
    $region52: #{input_conv.1} parent=1 // pred_region
      %115 = dma.done [#allocation14], 128
    $region53: #{input_conv.1} parent=1 // pred_fallthru
      _
    // Predicated region
    $region54: #{input_conv.1} parent=1 // pred_check
      _
    $region55: #{input_conv.1} parent=1 // pred_check_branch
      %117 = sbr.rel (0) target = $region57
    $region56: #{input_conv.1} parent=1 // pred_region
      %118 = dma.done [#allocation17], 64
    $region57: #{input_conv.1} parent=1 // pred_fallthru
      _
    // Predicated region
    $region58: #{input_conv.1} parent=1 // pred_check
      _
    $region59: #{input_conv.1} parent=1 // pred_check_branch
      %120 = sbr.rel (0) target = $region61
    $region60: #{input_conv.1} parent=1 // pred_region
      %121 = dma.done [#allocation17], 128
    $region61: #{input_conv.1} parent=1 // pred_fallthru
      _
    // Predicated region
    $region62: #{input_conv.1} parent=1 // pred_check
      _
    $region63: #{input_conv.1} parent=1 // pred_check_branch
      %123 = sbr.rel (0) target = $region65
    $region64: #{input_conv.1} parent=1 // pred_region
      %124 = dma.done [#allocation20], 128
    $region65: #{input_conv.1} parent=1 // pred_fallthru
      _
    %v126 = vld [vmem:[#allocation10] sm:$0x7]
    %127 = vst [vmem:[#allocation2] sm:$0xff] 0.0
    %vm128 = vcmask 551936
    %129 = vst.msk [vmem:[#allocation2 + $0x8] sm:$0xf] %vm128, 0.0
    %130 = vst [vmem:[#allocation2 + $0xc] sm:$0xff] 0.0
    %131 = vst.msk [vmem:[#allocation2 + $0x14] sm:$0xf] %vm128, 0.0
    %v132 = vld [vmem:[#allocation7] sm:$0xf]
    %v133 = vld [vmem:[#allocation7 + $0x8] sm:$0xf]
    %136 = vrot.lane.b32.xlu0 %v132, 19
    %v137 = vpop.permute.xlu0 %136
    %138 = vrot.lane.b32.xlu0 %v133, 19
    %v139 = vpop.permute.xlu0 %138
    %vm142 = vcmask 281752
    %143 = vst.msk [vmem:[#allocation2] sm:$0xf] %vm142, %v137
    %144 = vst.msk [vmem:[#allocation2 + $0xc] sm:$0xf] %vm142, %v139
    %v145 = vld [vmem:[#allocation7] sm:$0xf]
    %v146 = vld [vmem:[#allocation7 + $0x8] sm:$0xf]
    %149 = vrot.lane.b32.xlu0 %v145, 21
    %v150 = vpop.permute.xlu0 %149
    %151 = vrot.lane.b32.xlu0 %v146, 21
    %v152 = vpop.permute.xlu0 %151
    %vm155 = vcmask 429352
    %156 = vst.msk [vmem:[#allocation2] sm:$0xf] %vm155, %v150
    %157 = vst.msk [vmem:[#allocation2 + $0xc] sm:$0xf] %vm155, %v152
    %v158 = vld [vmem:[#allocation7] sm:$0xf]
    %v159 = vld [vmem:[#allocation7 + $0x8] sm:$0xf]
    %162 = vrot.lane.b32.xlu0 %v158, 23
    %v163 = vpop.permute.xlu0 %162
    %164 = vrot.lane.b32.xlu0 %v159, 23
    %v165 = vpop.permute.xlu0 %164
    %vm168 = vcmask 576952
    %169 = vst.msk [vmem:[#allocation2] sm:$0xf] %vm168, %v163
    %170 = vst.msk [vmem:[#allocation2 + $0xc] sm:$0xf] %vm168, %v165
    %v171 = vld [vmem:[#allocation7] sm:$0xf]
    %v172 = vld [vmem:[#allocation7 + $0x8] sm:$0xf]
    %175 = vrot.lane.b32.xlu0 %v171, 25
    %v176 = vpop.permute.xlu0 %175
    %177 = vrot.lane.b32.xlu0 %v172, 25
    %v178 = vpop.permute.xlu0 %177
    %vm181 = vcmask 724552
    %182 = vst.msk [vmem:[#allocation2] sm:$0xf] %vm181, %v176
    %183 = vst.msk [vmem:[#allocation2 + $0xc] sm:$0xf] %vm181, %v178
    %v184 = vld [vmem:[#allocation7] sm:$0xf]
    %v185 = vld [vmem:[#allocation7 + $0x8] sm:$0xf]
    %188 = vrot.lane.b32.xlu0 %v184, 27
    %v189 = vpop.permute.xlu0 %188
    %190 = vrot.lane.b32.xlu0 %v185, 27
    %v191 = vpop.permute.xlu0 %190
    %vm194 = vcmask 872152
    %195 = vst.msk [vmem:[#allocation2] sm:$0xf] %vm194, %v189
    %196 = vst.msk [vmem:[#allocation2 + $0xc] sm:$0xf] %vm194, %v191
    %v197 = vld [vmem:[#allocation7] sm:$0xf]
    %v198 = vld [vmem:[#allocation7 + $0x8] sm:$0xf]
    %201 = vrot.lane.b32.xlu0 %v197, 29
    %v202 = vpop.permute.xlu0 %201
    %203 = vrot.lane.b32.xlu0 %v198, 29
    %v204 = vpop.permute.xlu0 %203
    %vm207 = vcmask 1019752
    %208 = vst.msk [vmem:[#allocation2] sm:$0xf] %vm207, %v202
    %209 = vst.msk [vmem:[#allocation2 + $0xc] sm:$0xf] %vm207, %v204
    %v210 = vld [vmem:[#allocation7] sm:$0xf]
    %v211 = vld [vmem:[#allocation7 + $0x8] sm:$0xf]
    %214 = vrot.lane.b32.xlu0 %v210, 31
    %v215 = vpop.permute.xlu0 %214
    %216 = vrot.lane.b32.xlu0 %v211, 31
    %v217 = vpop.permute.xlu0 %216
    %v218 = vrot.slane %v215, 4
    %v219 = vrot.slane %v217, 4
    %vm220 = vcmask 252928
    %v221 = vsel %vm220, %v218, %v215
    %v222 = vsel %vm220, %v219, %v217
    %vm225 = vcmask 1044472
    %vm226 = vcmask 121860
    %vm227 = vmor %vm226, %vm225
    %228 = vst.msk [vmem:[#allocation2] sm:$0xff] %vm227, %v221
    %229 = vst.msk [vmem:[#allocation2 + $0xc] sm:$0xff] %vm227, %v222
    %v230 = vld [vmem:[#allocation7] sm:$0xf]
    %v231 = vld [vmem:[#allocation7 + $0x8] sm:$0xf]
    %234 = vrot.lane.b32.xlu0 %v230, 33
    %v235 = vpop.permute.xlu0 %234
    %236 = vrot.lane.b32.xlu0 %v231, 33
    %v237 = vpop.permute.xlu0 %236
    %vm240 = vcmask 265352
    %241 = vst.msk [vmem:[#allocation2 + $0x4] sm:$0xf] %vm240, %v235
    %242 = vst.msk [vmem:[#allocation2 + $0x10] sm:$0xf] %vm240, %v237
    %v243 = vld [vmem:[#allocation7 + $0x4] sm:$0xf]
    %v244 = vld [vmem:[#allocation7 + $0xc] sm:$0xf]
    %247 = vrot.lane.b32.xlu0 %v243, 35
    %v248 = vpop.permute.xlu0 %247
    %249 = vrot.lane.b32.xlu0 %v244, 35
    %v250 = vpop.permute.xlu0 %249
    %vm253 = vcmask 412952
    %254 = vst.msk [vmem:[#allocation2 + $0x4] sm:$0xf] %vm253, %v248
    %255 = vst.msk [vmem:[#allocation2 + $0x10] sm:$0xf] %vm253, %v250
    %v256 = vld [vmem:[#allocation7 + $0x4] sm:$0xf]
    %v257 = vld [vmem:[#allocation7 + $0xc] sm:$0xf]
    %260 = vrot.lane.b32.xlu0 %v256, 37
    %v261 = vpop.permute.xlu0 %260
    %262 = vrot.lane.b32.xlu0 %v257, 37
    %v263 = vpop.permute.xlu0 %262
    %vm266 = vcmask 560552
    %267 = vst.msk [vmem:[#allocation2 + $0x4] sm:$0xf] %vm266, %v261
    %268 = vst.msk [vmem:[#allocation2 + $0x10] sm:$0xf] %vm266, %v263
    %v269 = vld [vmem:[#allocation7 + $0x4] sm:$0xf]
    %v270 = vld [vmem:[#allocation7 + $0xc] sm:$0xf]
    %273 = vrot.lane.b32.xlu0 %v269, 39
    %v274 = vpop.permute.xlu0 %273
    %275 = vrot.lane.b32.xlu0 %v270, 39
    %v276 = vpop.permute.xlu0 %275
    %vm279 = vcmask 708152
    %280 = vst.msk [vmem:[#allocation2 + $0x4] sm:$0xf] %vm279, %v274
    %281 = vst.msk [vmem:[#allocation2 + $0x10] sm:$0xf] %vm279, %v276
    %v282 = vld [vmem:[#allocation7 + $0x4] sm:$0xf]
    %v283 = vld [vmem:[#allocation7 + $0xc] sm:$0xf]
    %286 = vrot.lane.b32.xlu0 %v282, 41
    %v287 = vpop.permute.xlu0 %286
    %288 = vrot.lane.b32.xlu0 %v283, 41
    %v289 = vpop.permute.xlu0 %288
    %vm292 = vcmask 855752
    %293 = vst.msk [vmem:[#allocation2 + $0x4] sm:$0xf] %vm292, %v287
    %294 = vst.msk [vmem:[#allocation2 + $0x10] sm:$0xf] %vm292, %v289
    %v295 = vld [vmem:[#allocation7 + $0x4] sm:$0xf]
    %v296 = vld [vmem:[#allocation7 + $0xc] sm:$0xf]
    %299 = vrot.lane.b32.xlu0 %v295, 43
    %v300 = vpop.permute.xlu0 %299
    %301 = vrot.lane.b32.xlu0 %v296, 43
    %v302 = vpop.permute.xlu0 %301
    %vm305 = vcmask 1003352
    %306 = vst.msk [vmem:[#allocation2 + $0x4] sm:$0xf] %vm305, %v300
    %307 = vst.msk [vmem:[#allocation2 + $0x10] sm:$0xf] %vm305, %v302
    %v308 = vld [vmem:[#allocation7 + $0x4] sm:$0xf]
    %v309 = vld [vmem:[#allocation7 + $0xc] sm:$0xf]
    %312 = vrot.lane.b32.xlu0 %v308, 45
    %v313 = vpop.permute.xlu0 %312
    %314 = vrot.lane.b32.xlu0 %v309, 45
    %v315 = vpop.permute.xlu0 %314
    %v316 = vrot.slane %v313, 4
    %v317 = vrot.slane %v315, 4
    %vm318 = vcmask 367616
    %v319 = vsel %vm318, %v316, %v313
    %v320 = vsel %vm318, %v317, %v315
    %vm323 = vcmask 1044456
    %vm324 = vcmask 105476
    %vm325 = vmor %vm324, %vm323
    %326 = vst.msk [vmem:[#allocation2 + $0x4] sm:$0xff] %vm325, %v319
    %327 = vst.msk [vmem:[#allocation2 + $0x10] sm:$0xff] %vm325, %v320
    %v328 = vld [vmem:[#allocation7 + $0x4] sm:$0xf]
    %v329 = vld [vmem:[#allocation7 + $0xc] sm:$0xf]
    %332 = vrot.lane.b32.xlu0 %v328, 47
    %v333 = vpop.permute.xlu0 %332
    %334 = vrot.lane.b32.xlu0 %v329, 47
    %v335 = vpop.permute.xlu0 %334
    %vm338 = vcmask 248952
    %339 = vst.msk [vmem:[#allocation2 + $0x8] sm:$0xf] %vm338, %v333
    %340 = vst.msk [vmem:[#allocation2 + $0x14] sm:$0xf] %vm338, %v335
    %v341 = vld [vmem:[#allocation7 + $0x4] sm:$0xf]
    %v342 = vld [vmem:[#allocation7 + $0xc] sm:$0xf]
    %345 = vrot.lane.b32.xlu0 %v341, 49
    %v346 = vpop.permute.xlu0 %345
    %347 = vrot.lane.b32.xlu0 %v342, 49
    %v348 = vpop.permute.xlu0 %347
    %vm351 = vcmask 396552
    %352 = vst.msk [vmem:[#allocation2 + $0x8] sm:$0xf] %vm351, %v346
    %353 = vst.msk [vmem:[#allocation2 + $0x14] sm:$0xf] %vm351, %v348
    %v354 = vld [vmem:[#allocation2] sm:$0xff]
    %v355 = vld [vmem:[#allocation2 + $0x8] sm:$0xf]
    %v356 = vld [vmem:[#allocation2 + $0xc] sm:$0xff]
    %v357 = vld [vmem:[#allocation2 + $0x14] sm:$0xf]
    %v360 = vcombine.high %v354, %v354
    %v361 = vcombine.high %v356, %v356
    %364 = vst [vmem:[#allocation3] sm:$0xf] %v354
    %365 = vst [vmem:[#allocation3 + $0x8] sm:$0xf] %v360
    %vm366 = vcmask 240640
    %367 = vst.msk [vmem:[#allocation3 + $0x10] sm:$0xf] %vm366, %v355
    %368 = vst [vmem:[#allocation3 + $0x78] sm:$0xf] %v356
    %369 = vst [vmem:[#allocation3 + $0x80] sm:$0xf] %v361
    %370 = vst.msk [vmem:[#allocation3 + $0x88] sm:$0xf] %vm366, %v357
    %v371 = vld [vmem:[#allocation2] sm:$0xff]
    %v372 = vld [vmem:[#allocation2 + $0x8] sm:$0xf]
    %v373 = vld [vmem:[#allocation2 + $0xc] sm:$0xff]
    %v374 = vld [vmem:[#allocation2 + $0x14] sm:$0xf]
    %v379 = vcombine.low %v371, %v371
    %v380 = vcombine.low %v372, %v372
    %v381 = vcombine.low %v373, %v373
    %v382 = vcombine.low %v374, %v374
    %383 = vrot.lane.b32.xlu0 %v379, 127
    %v384 = vpop.permute.xlu0 %383
    %385 = vrot.lane.b32.xlu0 %v371, 127
    %v386 = vpop.permute.xlu0 %385
    %387 = vrot.lane.b32.xlu0 %v380, 127
    %v388 = vpop.permute.xlu0 %387
    %389 = vrot.lane.b32.xlu0 %v381, 127
    %v390 = vpop.permute.xlu0 %389
    %391 = vrot.lane.b32.xlu0 %v373, 127
    %v392 = vpop.permute.xlu0 %391
    %393 = vrot.lane.b32.xlu0 %v382, 127
    %v394 = vpop.permute.xlu0 %393
    %vm395 = vcmask 1039360
    %v396 = vsel %vm395, %v384, %v386
    %v397 = vsel %vm395, %v386, %v388
    %v398 = vsel %vm395, %v390, %v392
    %v399 = vsel %vm395, %v392, %v394
    %406 = vst [vmem:[#allocation3] sm:$0xf0] %v396
    %407 = vst [vmem:[#allocation3 + $0x8] sm:$0xf0] %v397
    %vm408 = vcmask 244740
    %409 = vst.msk [vmem:[#allocation3 + $0x10] sm:$0xf0] %vm408, %v388
    %410 = vst [vmem:[#allocation3 + $0x78] sm:$0xf0] %v398
    %411 = vst [vmem:[#allocation3 + $0x80] sm:$0xf0] %v399
    %412 = vst.msk [vmem:[#allocation3 + $0x88] sm:$0xf0] %vm408, %v394
    %v413 = vld [vmem:[#allocation2] sm:$0xff]
    %v414 = vld [vmem:[#allocation2 + $0x8] sm:$0xf]
    %v415 = vld [vmem:[#allocation2 + $0xc] sm:$0xff]
    %v416 = vld [vmem:[#allocation2 + $0x14] sm:$0xf]
    %v421 = vcombine.high %v413, %v413
    %v422 = vcombine.high %v415, %v415
    %423 = vrot.lane.b32.xlu0 %v413, 126
    %v424 = vpop.permute.xlu0 %423
    %425 = vrot.lane.b32.xlu0 %v421, 126
    %v426 = vpop.permute.xlu0 %425
    %427 = vrot.lane.b32.xlu0 %v414, 126
    %v428 = vpop.permute.xlu0 %427
    %429 = vrot.lane.b32.xlu0 %v415, 126
    %v430 = vpop.permute.xlu0 %429
    %431 = vrot.lane.b32.xlu0 %v422, 126
    %v432 = vpop.permute.xlu0 %431
    %433 = vrot.lane.b32.xlu0 %v416, 126
    %v434 = vpop.permute.xlu0 %433
    %vm435 = vcmask 1031168
    %v436 = vsel %vm435, %v424, %v426
    %v437 = vsel %vm435, %v426, %v428
    %v438 = vsel %vm435, %v430, %v432
    %v439 = vsel %vm435, %v432, %v434
    %446 = vst [vmem:[#allocation3 + $0x18] sm:$0xf] %v436
    %447 = vst [vmem:[#allocation3 + $0x20] sm:$0xf] %v437
    %448 = vst.msk [vmem:[#allocation3 + $0x28] sm:$0xf] %vm366, %v428
    %449 = vst [vmem:[#allocation3 + $0x90] sm:$0xf] %v438
    %450 = vst [vmem:[#allocation3 + $0x98] sm:$0xf] %v439
    %451 = vst.msk [vmem:[#allocation3 + $0xa0] sm:$0xf] %vm366, %v434
    %v452 = vld [vmem:[#allocation2] sm:$0xff]
    %v453 = vld [vmem:[#allocation2 + $0x8] sm:$0xf]
    %v454 = vld [vmem:[#allocation2 + $0xc] sm:$0xff]
    %v455 = vld [vmem:[#allocation2 + $0x14] sm:$0xf]
    %v460 = vcombine.low %v452, %v452
    %v461 = vcombine.low %v453, %v453
    %v462 = vcombine.low %v454, %v454
    %v463 = vcombine.low %v455, %v455
    %464 = vrot.lane.b32.xlu0 %v460, 110
    %v465 = vpop.permute.xlu0 %464
    %466 = vrot.lane.b32.xlu0 %v452, 110
    %v467 = vpop.permute.xlu0 %466
    %468 = vrot.lane.b32.xlu0 %v461, 110
    %v469 = vpop.permute.xlu0 %468
    %470 = vrot.lane.b32.xlu0 %v462, 110
    %v471 = vpop.permute.xlu0 %470
    %472 = vrot.lane.b32.xlu0 %v454, 110
    %v473 = vpop.permute.xlu0 %472
    %474 = vrot.lane.b32.xlu0 %v463, 110
    %v475 = vpop.permute.xlu0 %474
    %vm476 = vcmask 900096
    %v477 = vsel %vm476, %v465, %v467
    %v478 = vsel %vm476, %v467, %v469
    %v479 = vsel %vm476, %v471, %v473
    %v480 = vsel %vm476, %v473, %v475
    %487 = vst [vmem:[#allocation3 + $0x18] sm:$0xf0] %v477
    %488 = vst [vmem:[#allocation3 + $0x20] sm:$0xf0] %v478
    %489 = vst.msk [vmem:[#allocation3 + $0x28] sm:$0xf0] %vm408, %v469
    %490 = vst [vmem:[#allocation3 + $0x90] sm:$0xf0] %v479
    %491 = vst [vmem:[#allocation3 + $0x98] sm:$0xf0] %v480
    %492 = vst.msk [vmem:[#allocation3 + $0xa0] sm:$0xf0] %vm408, %v475
    %v493 = vld [vmem:[#allocation2] sm:$0xff]
    %v494 = vld [vmem:[#allocation2 + $0x8] sm:$0xf]
    %v495 = vld [vmem:[#allocation2 + $0xc] sm:$0xff]
    %v496 = vld [vmem:[#allocation2 + $0x14] sm:$0xf]
    %v501 = vcombine.high %v493, %v493
    %v502 = vcombine.high %v495, %v495
    %503 = vrot.lane.b32.xlu0 %v493, 109
    %v504 = vpop.permute.xlu0 %503
    %505 = vrot.lane.b32.xlu0 %v501, 109
    %v506 = vpop.permute.xlu0 %505
    %507 = vrot.lane.b32.xlu0 %v494, 109
    %v508 = vpop.permute.xlu0 %507
    %509 = vrot.lane.b32.xlu0 %v495, 109
    %v510 = vpop.permute.xlu0 %509
    %511 = vrot.lane.b32.xlu0 %v502, 109
    %v512 = vpop.permute.xlu0 %511
    %513 = vrot.lane.b32.xlu0 %v496, 109
    %v514 = vpop.permute.xlu0 %513
    %vm515 = vcmask 891904
    %v516 = vsel %vm515, %v504, %v506
    %v517 = vsel %vm515, %v506, %v508
    %v518 = vsel %vm515, %v510, %v512
    %v519 = vsel %vm515, %v512, %v514
    %526 = vst [vmem:[#allocation3 + $0x30] sm:$0xf] %v516
    %527 = vst [vmem:[#allocation3 + $0x38] sm:$0xf] %v517
    %528 = vst.msk [vmem:[#allocation3 + $0x40] sm:$0xf] %vm366, %v508
    %529 = vst [vmem:[#allocation3 + $0xa8] sm:$0xf] %v518
    %530 = vst [vmem:[#allocation3 + $0xb0] sm:$0xf] %v519
    %531 = vst.msk [vmem:[#allocation3 + $0xb8] sm:$0xf] %vm366, %v514
    %v532 = vld [vmem:[#allocation2] sm:$0xff]
    %v533 = vld [vmem:[#allocation2 + $0x8] sm:$0xf]
    %v534 = vld [vmem:[#allocation2 + $0xc] sm:$0xff]
    %v535 = vld [vmem:[#allocation2 + $0x14] sm:$0xf]
    %v540 = vcombine.low %v532, %v532
    %v541 = vcombine.low %v533, %v533
    %v542 = vcombine.low %v534, %v534
    %v543 = vcombine.low %v535, %v535
    %544 = vrot.lane.b32.xlu0 %v540, 108
    %v545 = vpop.permute.xlu0 %544
    %546 = vrot.lane.b32.xlu0 %v532, 108
    %v547 = vpop.permute.xlu0 %546
    %548 = vrot.lane.b32.xlu0 %v541, 108
    %v549 = vpop.permute.xlu0 %548
    %550 = vrot.lane.b32.xlu0 %v542, 108
    %v551 = vpop.permute.xlu0 %550
    %552 = vrot.lane.b32.xlu0 %v534, 108
    %v553 = vpop.permute.xlu0 %552
    %554 = vrot.lane.b32.xlu0 %v543, 108
    %v555 = vpop.permute.xlu0 %554
    %vm556 = vcmask 883712
    %v557 = vsel %vm556, %v545, %v547
    %v558 = vsel %vm556, %v547, %v549
    %v559 = vsel %vm556, %v551, %v553
    %v560 = vsel %vm556, %v553, %v555
    %567 = vst [vmem:[#allocation3 + $0x30] sm:$0xf0] %v557
    %568 = vst [vmem:[#allocation3 + $0x38] sm:$0xf0] %v558
    %569 = vst.msk [vmem:[#allocation3 + $0x40] sm:$0xf0] %vm408, %v549
    %570 = vst [vmem:[#allocation3 + $0xa8] sm:$0xf0] %v559
    %571 = vst [vmem:[#allocation3 + $0xb0] sm:$0xf0] %v560
    %572 = vst.msk [vmem:[#allocation3 + $0xb8] sm:$0xf0] %vm408, %v555
    %v573 = vld [vmem:[#allocation2] sm:$0xff]
    %v574 = vld [vmem:[#allocation2 + $0x8] sm:$0xf]
    %v575 = vld [vmem:[#allocation2 + $0xc] sm:$0xff]
    %v576 = vld [vmem:[#allocation2 + $0x14] sm:$0xf]
    %v581 = vcombine.high %v573, %v573
    %v582 = vcombine.high %v575, %v575
    %583 = vrot.lane.b32.xlu0 %v573, 92
    %v584 = vpop.permute.xlu0 %583
    %585 = vrot.lane.b32.xlu0 %v581, 92
    %v586 = vpop.permute.xlu0 %585
    %587 = vrot.lane.b32.xlu0 %v574, 92
    %v588 = vpop.permute.xlu0 %587
    %589 = vrot.lane.b32.xlu0 %v575, 92
    %v590 = vpop.permute.xlu0 %589
    %591 = vrot.lane.b32.xlu0 %v582, 92
    %v592 = vpop.permute.xlu0 %591
    %593 = vrot.lane.b32.xlu0 %v576, 92
    %v594 = vpop.permute.xlu0 %593
    %vm595 = vcmask 752640
    %v596 = vsel %vm595, %v584, %v586
    %v597 = vsel %vm595, %v586, %v588
    %v598 = vsel %vm595, %v590, %v592
    %v599 = vsel %vm595, %v592, %v594
    %606 = vst [vmem:[#allocation3 + $0x48] sm:$0xf] %v596
    %607 = vst [vmem:[#allocation3 + $0x50] sm:$0xf] %v597
    %608 = vst.msk [vmem:[#allocation3 + $0x58] sm:$0xf] %vm366, %v588
    %609 = vst [vmem:[#allocation3 + $0xc0] sm:$0xf] %v598
    %610 = vst [vmem:[#allocation3 + $0xc8] sm:$0xf] %v599
    %611 = vst.msk [vmem:[#allocation3 + $0xd0] sm:$0xf] %vm366, %v594
    %v612 = vld [vmem:[#allocation2] sm:$0xff]
    %v613 = vld [vmem:[#allocation2 + $0x8] sm:$0xf]
    %v614 = vld [vmem:[#allocation2 + $0xc] sm:$0xff]
    %v615 = vld [vmem:[#allocation2 + $0x14] sm:$0xf]
    %v620 = vcombine.low %v612, %v612
    %v621 = vcombine.low %v613, %v613
    %v622 = vcombine.low %v614, %v614
    %v623 = vcombine.low %v615, %v615
    %624 = vrot.lane.b32.xlu0 %v620, 91
    %v625 = vpop.permute.xlu0 %624
    %626 = vrot.lane.b32.xlu0 %v612, 91
    %v627 = vpop.permute.xlu0 %626
    %628 = vrot.lane.b32.xlu0 %v621, 91
    %v629 = vpop.permute.xlu0 %628
    %630 = vrot.lane.b32.xlu0 %v622, 91
    %v631 = vpop.permute.xlu0 %630
    %632 = vrot.lane.b32.xlu0 %v614, 91
    %v633 = vpop.permute.xlu0 %632
    %634 = vrot.lane.b32.xlu0 %v623, 91
    %v635 = vpop.permute.xlu0 %634
    %vm636 = vcmask 744448
    %v637 = vsel %vm636, %v625, %v627
    %v638 = vsel %vm636, %v627, %v629
    %v639 = vsel %vm636, %v631, %v633
    %v640 = vsel %vm636, %v633, %v635
    %647 = vst [vmem:[#allocation3 + $0x48] sm:$0xf0] %v637
    %648 = vst [vmem:[#allocation3 + $0x50] sm:$0xf0] %v638
    %649 = vst.msk [vmem:[#allocation3 + $0x58] sm:$0xf0] %vm408, %v629
    %650 = vst [vmem:[#allocation3 + $0xc0] sm:$0xf0] %v639
    %651 = vst [vmem:[#allocation3 + $0xc8] sm:$0xf0] %v640
    %652 = vst.msk [vmem:[#allocation3 + $0xd0] sm:$0xf0] %vm408, %v635
    %v653 = vld [vmem:[#allocation2] sm:$0xff]
    %v654 = vld [vmem:[#allocation2 + $0x8] sm:$0xf]
    %v655 = vld [vmem:[#allocation2 + $0xc] sm:$0xff]
    %v656 = vld [vmem:[#allocation2 + $0x14] sm:$0xf]
    %v661 = vcombine.high %v653, %v653
    %v662 = vcombine.high %v655, %v655
    %663 = vrot.lane.b32.xlu0 %v653, 90
    %v664 = vpop.permute.xlu0 %663
    %665 = vrot.lane.b32.xlu0 %v661, 90
    %v666 = vpop.permute.xlu0 %665
    %667 = vrot.lane.b32.xlu0 %v654, 90
    %v668 = vpop.permute.xlu0 %667
    %669 = vrot.lane.b32.xlu0 %v655, 90
    %v670 = vpop.permute.xlu0 %669
    %671 = vrot.lane.b32.xlu0 %v662, 90
    %v672 = vpop.permute.xlu0 %671
    %673 = vrot.lane.b32.xlu0 %v656, 90
    %v674 = vpop.permute.xlu0 %673
    %vm675 = vcmask 736256
    %v676 = vsel %vm675, %v664, %v666
    %v677 = vsel %vm675, %v666, %v668
    %v678 = vsel %vm675, %v670, %v672
    %v679 = vsel %vm675, %v672, %v674
    %686 = vst [vmem:[#allocation3 + $0x60] sm:$0xf] %v676
    %687 = vst [vmem:[#allocation3 + $0x68] sm:$0xf] %v677
    %688 = vst.msk [vmem:[#allocation3 + $0x70] sm:$0xf] %vm366, %v668
    %689 = vst [vmem:[#allocation3 + $0xd8] sm:$0xf] %v678
    %690 = vst [vmem:[#allocation3 + $0xe0] sm:$0xf] %v679
    %691 = vst.msk [vmem:[#allocation3 + $0xe8] sm:$0xf] %vm366, %v674
    %v692 = vld [vmem:[#allocation12] sm:$0xf]
    %v693 = vld [vmem:[#allocation3] sm:$0xff]
    %v694 = vld [vmem:[#allocation3 + $0x8] sm:$0xff]
    %v695 = vld [vmem:[#allocation3 + $0x10] sm:$0xff]
    %v696 = vld [vmem:[#allocation3 + $0x18] sm:$0xff]
    %v697 = vld [vmem:[#allocation3 + $0x20] sm:$0xff]
    %v698 = vld [vmem:[#allocation3 + $0x28] sm:$0xff]
    %v699 = vld [vmem:[#allocation3 + $0x30] sm:$0xff]
    %v700 = vld [vmem:[#allocation3 + $0x38] sm:$0xff]
    %v701 = vld [vmem:[#allocation3 + $0x40] sm:$0xff]
    %v702 = vld [vmem:[#allocation3 + $0x48] sm:$0xff]
    %v703 = vld [vmem:[#allocation3 + $0x50] sm:$0xff]
    %v704 = vld [vmem:[#allocation3 + $0x58] sm:$0xff]
    %v705 = vld [vmem:[#allocation3 + $0x60] sm:$0xf]
    %v706 = vld [vmem:[#allocation3 + $0x68] sm:$0xf]
    %v707 = vld [vmem:[#allocation3 + $0x70] sm:$0xf]
    %v708 = vpack.c.bf16 %v696, %v693
    %v709 = vpack.c.bf16 %v697, %v694
    %v710 = vpack.c.bf16 %v698, %v695
    %v711 = vpack.c.bf16 %v702, %v699
    %v712 = vpack.c.bf16 %v703, %v700
    %v713 = vpack.c.bf16 %v704, %v701
    %v714 = vpack.c.bf16 %v705, %v705
    %v715 = vpack.c.bf16 %v706, %v706
    %v716 = vpack.c.bf16 %v707, %v707
    %vm717 = vcmask 293888
    %v719 = vsel %vm717, %v692, 0
    %vm721 = vcmask 1041408
    %v723 = vsel %vm721, %v714, 0
    %v726 = vsel %vm721, %v715, 0
    %v729 = vsel %vm721, %v716, 0
    %731 = vmatprep.subr.bf16.mxu0 %v709
    %732 = vmatpush1.bf16.msra.mxu0 %v708
    %733 = vmatprep.subr.bf16.mxu0 %v712
    %734 = vmatpush1.bf16.msra.mxu0 %v711
    %735 = vmatprep.subr.bf16.mxu0 %v726
    %736 = vmatpush1.bf16.msra.mxu0 %v723
    %737 = vmatprep.subr.bf16.mxu0 0
    %738 = vmatpush1.bf16.msra.mxu0 0
    %739 = vmatprep.subr.bf16.mxu0 0
    %740 = vmatpush1.bf16.msra.mxu0 0
    %741 = vmatprep.subr.bf16.mxu0 0
    %742 = vmatpush1.bf16.msra.mxu0 0
    %743 = vmatprep.subr.bf16.mxu0 0
    %744 = vmatpush1.bf16.msra.mxu0 0
    %745 = vmatprep.subr.bf16.mxu0 0
    %746 = vmatpush1.bf16.msra.mxu0 0
    %747 = vmatprep.subr.bf16.mxu0 0
    %748 = vmatpush1.bf16.msra.mxu0 0
    %749 = vmatprep.subr.bf16.mxu0 0
    %750 = vmatpush1.bf16.msra.mxu0 0
    %751 = vmatprep.subr.bf16.mxu0 0
    %752 = vmatpush1.bf16.msra.mxu0 0
    %753 = vmatprep.subr.bf16.mxu0 0
    %754 = vmatpush1.bf16.msra.mxu0 0
    %755 = vmatprep.subr.bf16.mxu0 0
    %756 = vmatpush1.bf16.msra.mxu0 0
    %757 = vmatprep.subr.bf16.mxu0 0
    %758 = vmatpush1.bf16.msra.mxu0 0
    %759 = vmatprep.subr.bf16.mxu0 0
    %760 = vmatpush1.bf16.msra.mxu0 0
    %761 = vmatprep.subr.bf16.mxu0 0
    %762 = vmatpush1.bf16.msra.mxu0 0
    %763 = vmatprep.mubr.bf16.mxu0 0
    %764 = vmatmul.mubr.bf16.gmra.mrb[0].mxu0 %v719
    %v765 = vpop.f32.mrb[0].mxu0
    %v766 = vadd.f32 0.0, %v765
    %v767 = vpop.f32.mrb[0].mxu0
    %v768 = vadd.f32 0.0, %v767
    %v769 = vpop.f32.mrb[0].mxu0
    %v770 = vpop.f32.mrb[0].mxu0
    %771 = vdwg.mxu0
    %772 = vmatprep.subr.bf16.mxu0 0
    %773 = vmatpush1.bf16.msra.mxu0 %v710
    %774 = vmatprep.subr.bf16.mxu0 0
    %775 = vmatpush1.bf16.msra.mxu0 %v713
    %776 = vmatprep.subr.bf16.mxu0 0
    %777 = vmatpush1.bf16.msra.mxu0 %v729
    %778 = vmatprep.subr.bf16.mxu0 0
    %779 = vmatpush1.bf16.msra.mxu0 0
    %780 = vmatprep.subr.bf16.mxu0 0
    %781 = vmatpush1.bf16.msra.mxu0 0
    %782 = vmatprep.subr.bf16.mxu0 0
    %783 = vmatpush1.bf16.msra.mxu0 0
    %784 = vmatprep.subr.bf16.mxu0 0
    %785 = vmatpush1.bf16.msra.mxu0 0
    %786 = vmatprep.subr.bf16.mxu0 0
    %787 = vmatpush1.bf16.msra.mxu0 0
    %788 = vmatprep.subr.bf16.mxu0 0
    %789 = vmatpush1.bf16.msra.mxu0 0
    %790 = vmatprep.subr.bf16.mxu0 0
    %791 = vmatpush1.bf16.msra.mxu0 0
    %792 = vmatprep.subr.bf16.mxu0 0
    %793 = vmatpush1.bf16.msra.mxu0 0
    %794 = vmatprep.subr.bf16.mxu0 0
    %795 = vmatpush1.bf16.msra.mxu0 0
    %796 = vmatprep.subr.bf16.mxu0 0
    %797 = vmatpush1.bf16.msra.mxu0 0
    %798 = vmatprep.subr.bf16.mxu0 0
    %799 = vmatpush1.bf16.msra.mxu0 0
    %800 = vmatprep.subr.bf16.mxu0 0
    %801 = vmatpush1.bf16.msra.mxu0 0
    %802 = vmatprep.subr.bf16.mxu0 0
    %803 = vmatpush1.bf16.msra.mxu0 0
    %804 = vmatprep.mubr.bf16.mxu0 0
    %805 = vmatmul.mubr.bf16.gmra.mrb[0].mxu0 %v719
    %v806 = vpop.f32.mrb[0].mxu0
    %v807 = vadd.f32 0.0, %v806
    %v808 = vpop.f32.mrb[0].mxu0
    %v809 = vpop.f32.mrb[0].mxu0
    %v810 = vpop.f32.mrb[0].mxu0
    %811 = vdwg.mxu0
    %812 = vst [vmem:[#allocation6] sm:$0xff] %v766
    %813 = vst [vmem:[#allocation6 + $0x8] sm:$0xff] %v768
    %vm814 = vcmask 244736
    %815 = vst.msk [vmem:[#allocation6 + $0x10] sm:$0xff] %vm814, %v807
    %s816 = scalar_lea.vmem [#allocation3], 120
    %v817 = vld [vmem:[%s816] sm:$0xff]
    %v818 = vld [vmem:[%s816 + $0x8] sm:$0xff]
    %v819 = vld [vmem:[%s816 + $0x10] sm:$0xff]
    %v820 = vld [vmem:[%s816 + $0x18] sm:$0xff]
    %v821 = vld [vmem:[%s816 + $0x20] sm:$0xff]
    %v822 = vld [vmem:[%s816 + $0x28] sm:$0xff]
    %v823 = vld [vmem:[%s816 + $0x30] sm:$0xff]
    %v824 = vld [vmem:[%s816 + $0x38] sm:$0xff]
    %v825 = vld [vmem:[%s816 + $0x40] sm:$0xff]
    %v826 = vld [vmem:[%s816 + $0x48] sm:$0xff]
    %v827 = vld [vmem:[%s816 + $0x50] sm:$0xff]
    %v828 = vld [vmem:[%s816 + $0x58] sm:$0xff]
    %v829 = vld [vmem:[%s816 + $0x60] sm:$0xf]
    %v830 = vld [vmem:[%s816 + $0x68] sm:$0xf]
    %v831 = vld [vmem:[%s816 + $0x70] sm:$0xf]
    %v832 = vpack.c.bf16 %v820, %v817
    %v833 = vpack.c.bf16 %v821, %v818
    %v834 = vpack.c.bf16 %v822, %v819
    %v835 = vpack.c.bf16 %v826, %v823
    %v836 = vpack.c.bf16 %v827, %v824
    %v837 = vpack.c.bf16 %v828, %v825
    %v838 = vpack.c.bf16 %v829, %v829
    %v839 = vpack.c.bf16 %v830, %v830
    %v840 = vpack.c.bf16 %v831, %v831
    %v842 = vsel %vm721, %v838, 0
    %v845 = vsel %vm721, %v839, 0
    %v848 = vsel %vm721, %v840, 0
    %850 = vmatprep.subr.bf16.mxu0 %v833
    %851 = vmatpush1.bf16.msra.mxu0 %v832
    %852 = vmatprep.subr.bf16.mxu0 %v836
    %853 = vmatpush1.bf16.msra.mxu0 %v835
    %854 = vmatprep.subr.bf16.mxu0 %v845
    %855 = vmatpush1.bf16.msra.mxu0 %v842
    %856 = vmatprep.subr.bf16.mxu0 0
    %857 = vmatpush1.bf16.msra.mxu0 0
    %858 = vmatprep.subr.bf16.mxu0 0
    %859 = vmatpush1.bf16.msra.mxu0 0
    %860 = vmatprep.subr.bf16.mxu0 0
    %861 = vmatpush1.bf16.msra.mxu0 0
    %862 = vmatprep.subr.bf16.mxu0 0
    %863 = vmatpush1.bf16.msra.mxu0 0
    %864 = vmatprep.subr.bf16.mxu0 0
    %865 = vmatpush1.bf16.msra.mxu0 0
    %866 = vmatprep.subr.bf16.mxu0 0
    %867 = vmatpush1.bf16.msra.mxu0 0
    %868 = vmatprep.subr.bf16.mxu0 0
    %869 = vmatpush1.bf16.msra.mxu0 0
    %870 = vmatprep.subr.bf16.mxu0 0
    %871 = vmatpush1.bf16.msra.mxu0 0
    %872 = vmatprep.subr.bf16.mxu0 0
    %873 = vmatpush1.bf16.msra.mxu0 0
    %874 = vmatprep.subr.bf16.mxu0 0
    %875 = vmatpush1.bf16.msra.mxu0 0
    %876 = vmatprep.subr.bf16.mxu0 0
    %877 = vmatpush1.bf16.msra.mxu0 0
    %878 = vmatprep.subr.bf16.mxu0 0
    %879 = vmatpush1.bf16.msra.mxu0 0
    %880 = vmatprep.subr.bf16.mxu0 0
    %881 = vmatpush1.bf16.msra.mxu0 0
    %882 = vmatprep.mubr.bf16.mxu0 0
    %883 = vmatmul.mubr.bf16.gmra.mrb[0].mxu0 %v719
    %v884 = vpop.f32.mrb[0].mxu0
    %v885 = vadd.f32 0.0, %v884
    %v886 = vpop.f32.mrb[0].mxu0
    %v887 = vadd.f32 0.0, %v886
    %v888 = vpop.f32.mrb[0].mxu0
    %v889 = vpop.f32.mrb[0].mxu0
    %890 = vdwg.mxu0
    %891 = vmatprep.subr.bf16.mxu0 0
    %892 = vmatpush1.bf16.msra.mxu0 %v834
    %893 = vmatprep.subr.bf16.mxu0 0
    %894 = vmatpush1.bf16.msra.mxu0 %v837
    %895 = vmatprep.subr.bf16.mxu0 0
    %896 = vmatpush1.bf16.msra.mxu0 %v848
    %897 = vmatprep.subr.bf16.mxu0 0
    %898 = vmatpush1.bf16.msra.mxu0 0
    %899 = vmatprep.subr.bf16.mxu0 0
    %900 = vmatpush1.bf16.msra.mxu0 0
    %901 = vmatprep.subr.bf16.mxu0 0
    %902 = vmatpush1.bf16.msra.mxu0 0
    %903 = vmatprep.subr.bf16.mxu0 0
    %904 = vmatpush1.bf16.msra.mxu0 0
    %905 = vmatprep.subr.bf16.mxu0 0
    %906 = vmatpush1.bf16.msra.mxu0 0
    %907 = vmatprep.subr.bf16.mxu0 0
    %908 = vmatpush1.bf16.msra.mxu0 0
    %909 = vmatprep.subr.bf16.mxu0 0
    %910 = vmatpush1.bf16.msra.mxu0 0
    %911 = vmatprep.subr.bf16.mxu0 0
    %912 = vmatpush1.bf16.msra.mxu0 0
    %913 = vmatprep.subr.bf16.mxu0 0
    %914 = vmatpush1.bf16.msra.mxu0 0
    %915 = vmatprep.subr.bf16.mxu0 0
    %916 = vmatpush1.bf16.msra.mxu0 0
    %917 = vmatprep.subr.bf16.mxu0 0
    %918 = vmatpush1.bf16.msra.mxu0 0
    %919 = vmatprep.subr.bf16.mxu0 0
    %920 = vmatpush1.bf16.msra.mxu0 0
    %921 = vmatprep.subr.bf16.mxu0 0
    %922 = vmatpush1.bf16.msra.mxu0 0
    %923 = vmatprep.mubr.bf16.mxu0 0
    %924 = vmatmul.mubr.bf16.gmra.mrb[0].mxu0 %v719
    %v925 = vpop.f32.mrb[0].mxu0
    %v926 = vadd.f32 0.0, %v925
    %v927 = vpop.f32.mrb[0].mxu0
    %v928 = vpop.f32.mrb[0].mxu0
    %v929 = vpop.f32.mrb[0].mxu0
    %930 = vdwg.mxu0
    %s931 = scalar_lea.vmem [#allocation6], 24
    %932 = vst [vmem:[%s931] sm:$0xff] %v885
    %933 = vst [vmem:[%s931 + $0x8] sm:$0xff] %v887
    %934 = vst.msk [vmem:[%s931 + $0x10] sm:$0xff] %vm814, %v926
    %v935 = vld [vmem:[#allocation6] sm:$0xff]
    %v936 = vld [vmem:[#allocation6 + $0x8] sm:$0xff]
    %v937 = vld [vmem:[#allocation6 + $0x10] sm:$0xff]
    %v938 = vld [vmem:[#allocation6 + $0x18] sm:$0xff]
    %v939 = vld [vmem:[#allocation6 + $0x20] sm:$0xff]
    %v940 = vld [vmem:[#allocation6 + $0x28] sm:$0xff]
    %v941 = vld [vmem:[#allocation13] sm:$0xff]
    %v942 = vld [vmem:[#allocation15] sm:$0xff]
    %v944 = vlaneseq
    %v945 = vshrl.u32 %v944, 7
    %v946 = vsub.s32 0, %v945
    %v947 = vrot.slane %v126, %v946
    %v948 = vlaneseq
    %v949 = vshrl.u32 %v948, 7
    %v950 = vsub.s32 1, %v949
    %v951 = vrot.slane %v126, %v950
    %v952 = vlaneseq
    %v953 = vshrl.u32 %v952, 7
    %v954 = vsub.s32 2, %v953
    %v955 = vrot.slane %v126, %v954
    %v959 = vmul.f32 %v935, %v947
    %v960 = vmul.f32 %v936, %v951
    %v961 = vmul.f32 %v937, %v955
    %v962 = vmul.f32 %v938, %v947
    %v963 = vmul.f32 %v939, %v951
    %v964 = vmul.f32 %v940, %v955
    %v965 = vadd.f32 %v959, %v960
    %v966 = vsel %vm814, %v961, 0.0
    %v967 = vadd.f32 %v965, %v966
    %968 = vadd.xlane.f32.xlu0 %v967
    %v969 = vpop.xlane.xlu0 %968
    %v970 = vadd.f32 %v962, %v963
    %v971 = vsel %vm814, %v964, 0.0
    %v972 = vadd.f32 %v970, %v971
    %973 = vadd.xlane.f32.xlu0 %v972
    %v974 = vpop.xlane.xlu0 %973
    %v975 = vadd.f32 %v969, %v974
    %v976 = vmul.f32 %v959, %v959
    %v977 = vmul.f32 %v960, %v960
    %v978 = vmul.f32 %v961, %v961
    %v979 = vmul.f32 %v962, %v962
    %v980 = vmul.f32 %v963, %v963
    %v981 = vmul.f32 %v964, %v964
    %v982 = vadd.f32 %v976, %v977
    %v983 = vsel %vm814, %v978, 0.0
    %v984 = vadd.f32 %v982, %v983
    %985 = vadd.xlane.f32.xlu0 %v984
    %v986 = vpop.xlane.xlu0 %985
    %v987 = vadd.f32 %v979, %v980
    %v988 = vsel %vm814, %v981, 0.0
    %v989 = vadd.f32 %v987, %v988
    %990 = vadd.xlane.f32.xlu0 %v989
    %v991 = vpop.xlane.xlu0 %990
    %v992 = vadd.f32 %v986, %v991
    %v993 = vmul.f32 %v975, 0.001953125
    %v994 = vmul.f32 %v992, 0.001953125
    %v995 = vmul.f32 %v993, %v993
    %v996 = vsub.f32 %v994, %v995
    %v997 = vmax.f32 %v996, 0.0
    %v998 = vadd.f32 %v997, 1e-05
    %v999 = vrsqrt.pop %v998
    %v1000 = vmul.f32 %v941, %v999
    %v1001 = vmul.f32 %v993, %v1000
    %v1002 = vsub.f32 %v942, %v1001
    %1004 = vset.pattern.permute.xlu0 0
    %1005 = vperm.xlu0 %1004, %v1000
    %v1006 = vpop.permute.xlu0 %1005
    %v1008 = vmul.f32 %v935, %v1006
    %v1009 = vmul.f32 %v936, %v1006
    %v1010 = vmul.f32 %v937, %v1006
    %v1011 = vmul.f32 %v938, %v1006
    %v1012 = vmul.f32 %v939, %v1006
    %v1013 = vmul.f32 %v940, %v1006
    %1015 = vset.pattern.permute.xlu0 0
    %1016 = vperm.xlu0 %1015, %v1002
    %v1017 = vpop.permute.xlu0 %1016
    %v1019 = vadd.f32 %v1008, %v1017
    %v1020 = vadd.f32 %v1009, %v1017
    %v1021 = vadd.f32 %v1010, %v1017
    %v1022 = vadd.f32 %v1011, %v1017
    %v1023 = vadd.f32 %v1012, %v1017
    %v1024 = vadd.f32 %v1013, %v1017
    %v1025 = vmax.f32 %v1019, 0.0
    %v1026 = vmax.f32 %v1020, 0.0
    %v1027 = vmax.f32 %v1021, 0.0
    %v1028 = vmax.f32 %v1022, 0.0
    %v1029 = vmax.f32 %v1023, 0.0
    %v1030 = vmax.f32 %v1024, 0.0
    %1031 = vst [vmem:[#allocation4] sm:$0xff] 0.0
    %1032 = vst [vmem:[#allocation4 + $0x8] sm:$0xff] 0.0
    %vm1033 = vcmask 556032
    %1034 = vst.msk [vmem:[#allocation4 + $0x10] sm:$0xff] %vm1033, 0.0
    %1035 = vst [vmem:[#allocation4 + $0x18] sm:$0xff] 0.0
    %1036 = vst [vmem:[#allocation4 + $0x20] sm:$0xff] 0.0
    %1037 = vst.msk [vmem:[#allocation4 + $0x28] sm:$0xff] %vm1033, 0.0
    %v1038 = vmul.f32 %v1025, %v947
    %v1039 = vmul.f32 %v1026, %v951
    %v1040 = vmul.f32 %v1027, %v955
    %v1041 = vmul.f32 %v1028, %v947
    %v1042 = vmul.f32 %v1029, %v951
    %v1043 = vmul.f32 %v1030, %v955
    %1050 = vrot.lane.b32.xlu0 %v1038, 19
    %v1051 = vpop.permute.xlu0 %1050
    %1052 = vrot.lane.b32.xlu0 %v1039, 19
    %v1053 = vpop.permute.xlu0 %1052
    %1054 = vrot.lane.b32.xlu0 %v1040, 19
    %v1055 = vpop.permute.xlu0 %1054
    %1056 = vrot.lane.b32.xlu0 %v1041, 19
    %v1057 = vpop.permute.xlu0 %1056
    %1058 = vrot.lane.b32.xlu0 %v1042, 19
    %v1059 = vpop.permute.xlu0 %1058
    %1060 = vrot.lane.b32.xlu0 %v1043, 19
    %v1061 = vpop.permute.xlu0 %1060
    %vm1062 = vcmask 154624
    %v1063 = vsel %vm1062, %v1051, %v1053
    %v1064 = vsel %vm1062, %v1053, %v1055
    %v1065 = vsel %vm1062, %v1057, %v1059
    %v1066 = vsel %vm1062, %v1059, %v1061
    %vm1073 = vcmask 1047704
    %1074 = vst.msk [vmem:[#allocation4] sm:$0xff] %vm1073, %v1051
    %1075 = vst [vmem:[#allocation4 + $0x8] sm:$0xff] %v1063
    %vm1076 = vcmask 400384
    %1077 = vst.msk [vmem:[#allocation4 + $0x10] sm:$0xff] %vm1076, %v1064
    %1078 = vst.msk [vmem:[#allocation4 + $0x18] sm:$0xff] %vm1073, %v1057
    %1079 = vst [vmem:[#allocation4 + $0x20] sm:$0xff] %v1065
    %1080 = vst.msk [vmem:[#allocation4 + $0x28] sm:$0xff] %vm1076, %v1066
    %v1081 = vld [vmem:[#allocation4] sm:$0xff]
    %v1082 = vld [vmem:[#allocation4 + $0x8] sm:$0xff]
    %v1083 = vld [vmem:[#allocation4 + $0x10] sm:$0xff]
    %v1084 = vld [vmem:[#allocation4 + $0x18] sm:$0xff]
    %v1085 = vld [vmem:[#allocation4 + $0x20] sm:$0xff]
    %v1086 = vld [vmem:[#allocation4 + $0x28] sm:$0xff]
    %1087 = vst [vmem:[#allocation5] sm:$0xff] %v1081
    %1088 = vst [vmem:[#allocation5 + $0x8] sm:$0xff] %v1082
    %1089 = vst.msk [vmem:[#allocation5 + $0x10] sm:$0xff] %vm814, %v1083
    %1090 = vst [vmem:[#allocation5 + $0xd8] sm:$0xff] %v1084
    %1091 = vst [vmem:[#allocation5 + $0xe0] sm:$0xff] %v1085
    %1092 = vst.msk [vmem:[#allocation5 + $0xe8] sm:$0xff] %vm814, %v1086
    %v1093 = vld [vmem:[#allocation4] sm:$0xff]
    %v1094 = vld [vmem:[#allocation4 + $0x8] sm:$0xff]
    %v1095 = vld [vmem:[#allocation4 + $0x10] sm:$0xff]
    %v1096 = vld [vmem:[#allocation4 + $0x18] sm:$0xff]
    %v1097 = vld [vmem:[#allocation4 + $0x20] sm:$0xff]
    %v1098 = vld [vmem:[#allocation4 + $0x28] sm:$0xff]
    %1105 = vrot.lane.b32.xlu0 %v1093, 127
    %v1106 = vpop.permute.xlu0 %1105
    %1107 = vrot.lane.b32.xlu0 %v1094, 127
    %v1108 = vpop.permute.xlu0 %1107
    %1109 = vrot.lane.b32.xlu0 %v1095, 127
    %v1110 = vpop.permute.xlu0 %1109
    %1111 = vrot.lane.b32.xlu0 %v1096, 127
    %v1112 = vpop.permute.xlu0 %1111
    %1113 = vrot.lane.b32.xlu0 %v1097, 127
    %v1114 = vpop.permute.xlu0 %1113
    %1115 = vrot.lane.b32.xlu0 %v1098, 127
    %v1116 = vpop.permute.xlu0 %1115
    %v1117 = vsel %vm395, %v1106, %v1108
    %v1118 = vsel %vm395, %v1108, %v1110
    %v1119 = vsel %vm395, %v1112, %v1114
    %v1120 = vsel %vm395, %v1114, %v1116
    %1127 = vst [vmem:[#allocation5 + $0x18] sm:$0xff] %v1117
    %1128 = vst [vmem:[#allocation5 + $0x20] sm:$0xff] %v1118
    %1129 = vst.msk [vmem:[#allocation5 + $0x28] sm:$0xff] %vm814, %v1110
    %1130 = vst [vmem:[#allocation5 + $0xf0] sm:$0xff] %v1119
    %1131 = vst [vmem:[#allocation5 + $0xf8] sm:$0xff] %v1120
    %1132 = vst.msk [vmem:[#allocation5 + $0x100] sm:$0xff] %vm814, %v1116
    %v1133 = vld [vmem:[#allocation4] sm:$0xff]
    %v1134 = vld [vmem:[#allocation4 + $0x8] sm:$0xff]
    %v1135 = vld [vmem:[#allocation4 + $0x10] sm:$0xff]
    %v1136 = vld [vmem:[#allocation4 + $0x18] sm:$0xff]
    %v1137 = vld [vmem:[#allocation4 + $0x20] sm:$0xff]
    %v1138 = vld [vmem:[#allocation4 + $0x28] sm:$0xff]
    %1145 = vrot.lane.b32.xlu0 %v1133, 126
    %v1146 = vpop.permute.xlu0 %1145
    %1147 = vrot.lane.b32.xlu0 %v1134, 126
    %v1148 = vpop.permute.xlu0 %1147
    %1149 = vrot.lane.b32.xlu0 %v1135, 126
    %v1150 = vpop.permute.xlu0 %1149
    %1151 = vrot.lane.b32.xlu0 %v1136, 126
    %v1152 = vpop.permute.xlu0 %1151
    %1153 = vrot.lane.b32.xlu0 %v1137, 126
    %v1154 = vpop.permute.xlu0 %1153
    %1155 = vrot.lane.b32.xlu0 %v1138, 126
    %v1156 = vpop.permute.xlu0 %1155
    %v1157 = vsel %vm435, %v1146, %v1148
    %v1158 = vsel %vm435, %v1148, %v1150
    %v1159 = vsel %vm435, %v1152, %v1154
    %v1160 = vsel %vm435, %v1154, %v1156
    %1167 = vst [vmem:[#allocation5 + $0x30] sm:$0xff] %v1157
    %1168 = vst [vmem:[#allocation5 + $0x38] sm:$0xff] %v1158
    %1169 = vst.msk [vmem:[#allocation5 + $0x40] sm:$0xff] %vm814, %v1150
    %1170 = vst [vmem:[#allocation5 + $0x108] sm:$0xff] %v1159
    %1171 = vst [vmem:[#allocation5 + $0x110] sm:$0xff] %v1160
    %1172 = vst.msk [vmem:[#allocation5 + $0x118] sm:$0xff] %vm814, %v1156
    %v1173 = vld [vmem:[#allocation4] sm:$0xff]
    %v1174 = vld [vmem:[#allocation4 + $0x8] sm:$0xff]
    %v1175 = vld [vmem:[#allocation4 + $0x10] sm:$0xff]
    %v1176 = vld [vmem:[#allocation4 + $0x18] sm:$0xff]
    %v1177 = vld [vmem:[#allocation4 + $0x20] sm:$0xff]
    %v1178 = vld [vmem:[#allocation4 + $0x28] sm:$0xff]
    %1185 = vrot.lane.b32.xlu0 %v1173, 110
    %v1186 = vpop.permute.xlu0 %1185
    %1187 = vrot.lane.b32.xlu0 %v1174, 110
    %v1188 = vpop.permute.xlu0 %1187
    %1189 = vrot.lane.b32.xlu0 %v1175, 110
    %v1190 = vpop.permute.xlu0 %1189
    %1191 = vrot.lane.b32.xlu0 %v1176, 110
    %v1192 = vpop.permute.xlu0 %1191
    %1193 = vrot.lane.b32.xlu0 %v1177, 110
    %v1194 = vpop.permute.xlu0 %1193
    %1195 = vrot.lane.b32.xlu0 %v1178, 110
    %v1196 = vpop.permute.xlu0 %1195
    %v1197 = vsel %vm476, %v1186, %v1188
    %v1198 = vsel %vm476, %v1188, %v1190
    %v1199 = vsel %vm476, %v1192, %v1194
    %v1200 = vsel %vm476, %v1194, %v1196
    %1207 = vst [vmem:[#allocation5 + $0x48] sm:$0xff] %v1197
    %1208 = vst [vmem:[#allocation5 + $0x50] sm:$0xff] %v1198
    %1209 = vst.msk [vmem:[#allocation5 + $0x58] sm:$0xff] %vm814, %v1190
    %1210 = vst [vmem:[#allocation5 + $0x120] sm:$0xff] %v1199
    %1211 = vst [vmem:[#allocation5 + $0x128] sm:$0xff] %v1200
    %1212 = vst.msk [vmem:[#allocation5 + $0x130] sm:$0xff] %vm814, %v1196
    %v1213 = vld [vmem:[#allocation4] sm:$0xff]
    %v1214 = vld [vmem:[#allocation4 + $0x8] sm:$0xff]
    %v1215 = vld [vmem:[#allocation4 + $0x10] sm:$0xff]
    %v1216 = vld [vmem:[#allocation4 + $0x18] sm:$0xff]
    %v1217 = vld [vmem:[#allocation4 + $0x20] sm:$0xff]
    %v1218 = vld [vmem:[#allocation4 + $0x28] sm:$0xff]
    %1225 = vrot.lane.b32.xlu0 %v1213, 109
    %v1226 = vpop.permute.xlu0 %1225
    %1227 = vrot.lane.b32.xlu0 %v1214, 109
    %v1228 = vpop.permute.xlu0 %1227
    %1229 = vrot.lane.b32.xlu0 %v1215, 109
    %v1230 = vpop.permute.xlu0 %1229
    %1231 = vrot.lane.b32.xlu0 %v1216, 109
    %v1232 = vpop.permute.xlu0 %1231
    %1233 = vrot.lane.b32.xlu0 %v1217, 109
    %v1234 = vpop.permute.xlu0 %1233
    %1235 = vrot.lane.b32.xlu0 %v1218, 109
    %v1236 = vpop.permute.xlu0 %1235
    %v1237 = vsel %vm515, %v1226, %v1228
    %v1238 = vsel %vm515, %v1228, %v1230
    %v1239 = vsel %vm515, %v1232, %v1234
    %v1240 = vsel %vm515, %v1234, %v1236
    %1247 = vst [vmem:[#allocation5 + $0x60] sm:$0xff] %v1237
    %1248 = vst [vmem:[#allocation5 + $0x68] sm:$0xff] %v1238
    %1249 = vst.msk [vmem:[#allocation5 + $0x70] sm:$0xff] %vm814, %v1230
    %1250 = vst [vmem:[#allocation5 + $0x138] sm:$0xff] %v1239
    %1251 = vst [vmem:[#allocation5 + $0x140] sm:$0xff] %v1240
    %1252 = vst.msk [vmem:[#allocation5 + $0x148] sm:$0xff] %vm814, %v1236
    %v1253 = vld [vmem:[#allocation4] sm:$0xff]
    %v1254 = vld [vmem:[#allocation4 + $0x8] sm:$0xff]
    %v1255 = vld [vmem:[#allocation4 + $0x10] sm:$0xff]
    %v1256 = vld [vmem:[#allocation4 + $0x18] sm:$0xff]
    %v1257 = vld [vmem:[#allocation4 + $0x20] sm:$0xff]
    %v1258 = vld [vmem:[#allocation4 + $0x28] sm:$0xff]
    %1265 = vrot.lane.b32.xlu0 %v1253, 108
    %v1266 = vpop.permute.xlu0 %1265
    %1267 = vrot.lane.b32.xlu0 %v1254, 108
    %v1268 = vpop.permute.xlu0 %1267
    %1269 = vrot.lane.b32.xlu0 %v1255, 108
    %v1270 = vpop.permute.xlu0 %1269
    %1271 = vrot.lane.b32.xlu0 %v1256, 108
    %v1272 = vpop.permute.xlu0 %1271
    %1273 = vrot.lane.b32.xlu0 %v1257, 108
    %v1274 = vpop.permute.xlu0 %1273
    %1275 = vrot.lane.b32.xlu0 %v1258, 108
    %v1276 = vpop.permute.xlu0 %1275
    %v1277 = vsel %vm556, %v1266, %v1268
    %v1278 = vsel %vm556, %v1268, %v1270
    %v1279 = vsel %vm556, %v1272, %v1274
    %v1280 = vsel %vm556, %v1274, %v1276
    %1287 = vst [vmem:[#allocation5 + $0x78] sm:$0xff] %v1277
    %1288 = vst [vmem:[#allocation5 + $0x80] sm:$0xff] %v1278
    %1289 = vst.msk [vmem:[#allocation5 + $0x88] sm:$0xff] %vm814, %v1270
    %1290 = vst [vmem:[#allocation5 + $0x150] sm:$0xff] %v1279
    %1291 = vst [vmem:[#allocation5 + $0x158] sm:$0xff] %v1280
    %1292 = vst.msk [vmem:[#allocation5 + $0x160] sm:$0xff] %vm814, %v1276
    %v1293 = vld [vmem:[#allocation4] sm:$0xff]
    %v1294 = vld [vmem:[#allocation4 + $0x8] sm:$0xff]
    %v1295 = vld [vmem:[#allocation4 + $0x10] sm:$0xff]
    %v1296 = vld [vmem:[#allocation4 + $0x18] sm:$0xff]
    %v1297 = vld [vmem:[#allocation4 + $0x20] sm:$0xff]
    %v1298 = vld [vmem:[#allocation4 + $0x28] sm:$0xff]
    %1305 = vrot.lane.b32.xlu0 %v1293, 92
    %v1306 = vpop.permute.xlu0 %1305
    %1307 = vrot.lane.b32.xlu0 %v1294, 92
    %v1308 = vpop.permute.xlu0 %1307
    %1309 = vrot.lane.b32.xlu0 %v1295, 92
    %v1310 = vpop.permute.xlu0 %1309
    %1311 = vrot.lane.b32.xlu0 %v1296, 92
    %v1312 = vpop.permute.xlu0 %1311
    %1313 = vrot.lane.b32.xlu0 %v1297, 92
    %v1314 = vpop.permute.xlu0 %1313
    %1315 = vrot.lane.b32.xlu0 %v1298, 92
    %v1316 = vpop.permute.xlu0 %1315
    %v1317 = vsel %vm595, %v1306, %v1308
    %v1318 = vsel %vm595, %v1308, %v1310
    %v1319 = vsel %vm595, %v1312, %v1314
    %v1320 = vsel %vm595, %v1314, %v1316
    %1327 = vst [vmem:[#allocation5 + $0x90] sm:$0xff] %v1317
    %1328 = vst [vmem:[#allocation5 + $0x98] sm:$0xff] %v1318
    %1329 = vst.msk [vmem:[#allocation5 + $0xa0] sm:$0xff] %vm814, %v1310
    %1330 = vst [vmem:[#allocation5 + $0x168] sm:$0xff] %v1319
    %1331 = vst [vmem:[#allocation5 + $0x170] sm:$0xff] %v1320
    %1332 = vst.msk [vmem:[#allocation5 + $0x178] sm:$0xff] %vm814, %v1316
    %v1333 = vld [vmem:[#allocation4] sm:$0xff]
    %v1334 = vld [vmem:[#allocation4 + $0x8] sm:$0xff]
    %v1335 = vld [vmem:[#allocation4 + $0x10] sm:$0xff]
    %v1336 = vld [vmem:[#allocation4 + $0x18] sm:$0xff]
    %v1337 = vld [vmem:[#allocation4 + $0x20] sm:$0xff]
    %v1338 = vld [vmem:[#allocation4 + $0x28] sm:$0xff]
    %1345 = vrot.lane.b32.xlu0 %v1333, 91
    %v1346 = vpop.permute.xlu0 %1345
    %1347 = vrot.lane.b32.xlu0 %v1334, 91
    %v1348 = vpop.permute.xlu0 %1347
    %1349 = vrot.lane.b32.xlu0 %v1335, 91
    %v1350 = vpop.permute.xlu0 %1349
    %1351 = vrot.lane.b32.xlu0 %v1336, 91
    %v1352 = vpop.permute.xlu0 %1351
    %1353 = vrot.lane.b32.xlu0 %v1337, 91
    %v1354 = vpop.permute.xlu0 %1353
    %1355 = vrot.lane.b32.xlu0 %v1338, 91
    %v1356 = vpop.permute.xlu0 %1355
    %v1357 = vsel %vm636, %v1346, %v1348
    %v1358 = vsel %vm636, %v1348, %v1350
    %v1359 = vsel %vm636, %v1352, %v1354
    %v1360 = vsel %vm636, %v1354, %v1356
    %1367 = vst [vmem:[#allocation5 + $0xa8] sm:$0xff] %v1357
    %1368 = vst [vmem:[#allocation5 + $0xb0] sm:$0xff] %v1358
    %1369 = vst.msk [vmem:[#allocation5 + $0xb8] sm:$0xff] %vm814, %v1350
    %1370 = vst [vmem:[#allocation5 + $0x180] sm:$0xff] %v1359
    %1371 = vst [vmem:[#allocation5 + $0x188] sm:$0xff] %v1360
    %1372 = vst.msk [vmem:[#allocation5 + $0x190] sm:$0xff] %vm814, %v1356
    %v1373 = vld [vmem:[#allocation4] sm:$0xff]
    %v1374 = vld [vmem:[#allocation4 + $0x8] sm:$0xff]
    %v1375 = vld [vmem:[#allocation4 + $0x10] sm:$0xff]
    %v1376 = vld [vmem:[#allocation4 + $0x18] sm:$0xff]
    %v1377 = vld [vmem:[#allocation4 + $0x20] sm:$0xff]
    %v1378 = vld [vmem:[#allocation4 + $0x28] sm:$0xff]
    %1385 = vrot.lane.b32.xlu0 %v1373, 90
    %v1386 = vpop.permute.xlu0 %1385
    %1387 = vrot.lane.b32.xlu0 %v1374, 90
    %v1388 = vpop.permute.xlu0 %1387
    %1389 = vrot.lane.b32.xlu0 %v1375, 90
    %v1390 = vpop.permute.xlu0 %1389
    %1391 = vrot.lane.b32.xlu0 %v1376, 90
    %v1392 = vpop.permute.xlu0 %1391
    %1393 = vrot.lane.b32.xlu0 %v1377, 90
    %v1394 = vpop.permute.xlu0 %1393
    %1395 = vrot.lane.b32.xlu0 %v1378, 90
    %v1396 = vpop.permute.xlu0 %1395
    %v1397 = vsel %vm675, %v1386, %v1388
    %v1398 = vsel %vm675, %v1388, %v1390
    %v1399 = vsel %vm675, %v1392, %v1394
    %v1400 = vsel %vm675, %v1394, %v1396
    %1407 = vst [vmem:[#allocation5 + $0xc0] sm:$0xff] %v1397
    %1408 = vst [vmem:[#allocation5 + $0xc8] sm:$0xff] %v1398
    %1409 = vst.msk [vmem:[#allocation5 + $0xd0] sm:$0xff] %vm814, %v1390
    %1410 = vst [vmem:[#allocation5 + $0x198] sm:$0xff] %v1399
    %1411 = vst [vmem:[#allocation5 + $0x1a0] sm:$0xff] %v1400
    %1412 = vst.msk [vmem:[#allocation5 + $0x1a8] sm:$0xff] %vm814, %v1396
    %v1413 = vld [vmem:[#allocation16] sm:$0xf]
    %v1414 = vld [vmem:[#allocation5] sm:$0xff]
    %v1415 = vld [vmem:[#allocation5 + $0x8] sm:$0xff]
    %v1416 = vld [vmem:[#allocation5 + $0x10] sm:$0xff]
    %v1417 = vld [vmem:[#allocation5 + $0x18] sm:$0xff]
    %v1418 = vld [vmem:[#allocation5 + $0x20] sm:$0xff]
    %v1419 = vld [vmem:[#allocation5 + $0x28] sm:$0xff]
    %v1420 = vld [vmem:[#allocation5 + $0x30] sm:$0xff]
    %v1421 = vld [vmem:[#allocation5 + $0x38] sm:$0xff]
    %v1422 = vld [vmem:[#allocation5 + $0x40] sm:$0xff]
    %v1423 = vld [vmem:[#allocation5 + $0x48] sm:$0xff]
    %v1424 = vld [vmem:[#allocation5 + $0x50] sm:$0xff]
    %v1425 = vld [vmem:[#allocation5 + $0x58] sm:$0xff]
    %v1426 = vld [vmem:[#allocation5 + $0x60] sm:$0xff]
    %v1427 = vld [vmem:[#allocation5 + $0x68] sm:$0xff]
    %v1428 = vld [vmem:[#allocation5 + $0x70] sm:$0xff]
    %v1429 = vld [vmem:[#allocation5 + $0x78] sm:$0xff]
    %v1430 = vld [vmem:[#allocation5 + $0x80] sm:$0xff]
    %v1431 = vld [vmem:[#allocation5 + $0x88] sm:$0xff]
    %v1432 = vld [vmem:[#allocation5 + $0x90] sm:$0xff]
    %v1433 = vld [vmem:[#allocation5 + $0x98] sm:$0xff]
    %v1434 = vld [vmem:[#allocation5 + $0xa0] sm:$0xff]
    %v1435 = vld [vmem:[#allocation5 + $0xa8] sm:$0xff]
    %v1436 = vld [vmem:[#allocation5 + $0xb0] sm:$0xff]
    %v1437 = vld [vmem:[#allocation5 + $0xb8] sm:$0xff]
    %v1438 = vld [vmem:[#allocation5 + $0xc0] sm:$0xff]
    %v1439 = vld [vmem:[#allocation5 + $0xc8] sm:$0xff]
    %v1440 = vld [vmem:[#allocation5 + $0xd0] sm:$0xff]
    %v1441 = vpack.c.bf16 %v1417, %v1414
    %v1442 = vpack.c.bf16 %v1418, %v1415
    %v1443 = vpack.c.bf16 %v1419, %v1416
    %v1444 = vpack.c.bf16 %v1423, %v1420
    %v1445 = vpack.c.bf16 %v1424, %v1421
    %v1446 = vpack.c.bf16 %v1425, %v1422
    %v1447 = vpack.c.bf16 %v1429, %v1426
    %v1448 = vpack.c.bf16 %v1430, %v1427
    %v1449 = vpack.c.bf16 %v1431, %v1428
    %v1450 = vpack.c.bf16 %v1435, %v1432
    %v1451 = vpack.c.bf16 %v1436, %v1433
    %v1452 = vpack.c.bf16 %v1437, %v1434
    %v1453 = vpack.c.bf16 %v1438, %v1438
    %v1454 = vpack.c.bf16 %v1439, %v1439
    %v1455 = vpack.c.bf16 %v1440, %v1440
    %vm1456 = vcmask 588800
    %v1458 = vsel %vm1456, %v1413, 0
    %vm1460 = vcmask 1043456
    %v1462 = vsel %vm1460, %v1453, 0
    %v1465 = vsel %vm1460, %v1454, 0
    %v1468 = vsel %vm1460, %v1455, 0
    %1470 = vmatprep.subr.bf16.mxu0 %v1442
    %1471 = vmatpush1.bf16.msra.mxu0 %v1441
    %1472 = vmatprep.subr.bf16.mxu0 %v1445
    %1473 = vmatpush1.bf16.msra.mxu0 %v1444
    %1474 = vmatprep.subr.bf16.mxu0 %v1448
    %1475 = vmatpush1.bf16.msra.mxu0 %v1447
    %1476 = vmatprep.subr.bf16.mxu0 %v1451
    %1477 = vmatpush1.bf16.msra.mxu0 %v1450
    %1478 = vmatprep.subr.bf16.mxu0 %v1465
    %1479 = vmatpush1.bf16.msra.mxu0 %v1462
    %1480 = vmatprep.subr.bf16.mxu0 0
    %1481 = vmatpush1.bf16.msra.mxu0 0
    %1482 = vmatprep.subr.bf16.mxu0 0
    %1483 = vmatpush1.bf16.msra.mxu0 0
    %1484 = vmatprep.subr.bf16.mxu0 0
    %1485 = vmatpush1.bf16.msra.mxu0 0
    %1486 = vmatprep.subr.bf16.mxu0 0
    %1487 = vmatpush1.bf16.msra.mxu0 0
    %1488 = vmatprep.subr.bf16.mxu0 0
    %1489 = vmatpush1.bf16.msra.mxu0 0
    %1490 = vmatprep.subr.bf16.mxu0 0
    %1491 = vmatpush1.bf16.msra.mxu0 0
    %1492 = vmatprep.subr.bf16.mxu0 0
    %1493 = vmatpush1.bf16.msra.mxu0 0
    %1494 = vmatprep.subr.bf16.mxu0 0
    %1495 = vmatpush1.bf16.msra.mxu0 0
    %1496 = vmatprep.subr.bf16.mxu0 0
    %1497 = vmatpush1.bf16.msra.mxu0 0
    %1498 = vmatprep.subr.bf16.mxu0 0
    %1499 = vmatpush1.bf16.msra.mxu0 0
    %1500 = vmatprep.subr.bf16.mxu0 0
    %1501 = vmatpush1.bf16.msra.mxu0 0
    %1502 = vmatprep.mubr.bf16.mxu0 0
    %1503 = vmatmul.mubr.bf16.gmra.mrb[0].mxu0 %v1458
    %v1504 = vpop.f32.mrb[0].mxu0
    %v1505 = vadd.f32 0.0, %v1504
    %v1506 = vpop.f32.mrb[0].mxu0
    %v1507 = vadd.f32 0.0, %v1506
    %v1508 = vpop.f32.mrb[0].mxu0
    %v1509 = vpop.f32.mrb[0].mxu0
    %1510 = vdwg.mxu0
    %1511 = vmatprep.subr.bf16.mxu0 0
    %1512 = vmatpush1.bf16.msra.mxu0 %v1443
    %1513 = vmatprep.subr.bf16.mxu0 0
    %1514 = vmatpush1.bf16.msra.mxu0 %v1446
    %1515 = vmatprep.subr.bf16.mxu0 0
    %1516 = vmatpush1.bf16.msra.mxu0 %v1449
    %1517 = vmatprep.subr.bf16.mxu0 0
    %1518 = vmatpush1.bf16.msra.mxu0 %v1452
    %1519 = vmatprep.subr.bf16.mxu0 0
    %1520 = vmatpush1.bf16.msra.mxu0 %v1468
    %1521 = vmatprep.subr.bf16.mxu0 0
    %1522 = vmatpush1.bf16.msra.mxu0 0
    %1523 = vmatprep.subr.bf16.mxu0 0
    %1524 = vmatpush1.bf16.msra.mxu0 0
    %1525 = vmatprep.subr.bf16.mxu0 0
    %1526 = vmatpush1.bf16.msra.mxu0 0
    %1527 = vmatprep.subr.bf16.mxu0 0
    %1528 = vmatpush1.bf16.msra.mxu0 0
    %1529 = vmatprep.subr.bf16.mxu0 0
    %1530 = vmatpush1.bf16.msra.mxu0 0
    %1531 = vmatprep.subr.bf16.mxu0 0
    %1532 = vmatpush1.bf16.msra.mxu0 0
    %1533 = vmatprep.subr.bf16.mxu0 0
    %1534 = vmatpush1.bf16.msra.mxu0 0
    %1535 = vmatprep.subr.bf16.mxu0 0
    %1536 = vmatpush1.bf16.msra.mxu0 0
    %1537 = vmatprep.subr.bf16.mxu0 0
    %1538 = vmatpush1.bf16.msra.mxu0 0
    %1539 = vmatprep.subr.bf16.mxu0 0
    %1540 = vmatpush1.bf16.msra.mxu0 0
    %1541 = vmatprep.subr.bf16.mxu0 0
    %1542 = vmatpush1.bf16.msra.mxu0 0
    %1543 = vmatprep.mubr.bf16.mxu0 0
    %1544 = vmatmul.mubr.bf16.gmra.mrb[0].mxu0 %v1458
    %v1545 = vpop.f32.mrb[0].mxu0
    %v1546 = vadd.f32 0.0, %v1545
    %v1547 = vpop.f32.mrb[0].mxu0
    %v1548 = vpop.f32.mrb[0].mxu0
    %v1549 = vpop.f32.mrb[0].mxu0
    %1550 = vdwg.mxu0
    %1551 = vst [vmem:[#allocation6] sm:$0xff] %v1505
    %1552 = vst [vmem:[#allocation6 + $0x8] sm:$0xff] %v1507
    %1553 = vst.msk [vmem:[#allocation6 + $0x10] sm:$0xff] %vm814, %v1546
    %s1554 = scalar_lea.vmem [#allocation5], 216
    %v1555 = vld [vmem:[%s1554] sm:$0xff]
    %v1556 = vld [vmem:[%s1554 + $0x8] sm:$0xff]
    %v1557 = vld [vmem:[%s1554 + $0x10] sm:$0xff]
    %v1558 = vld [vmem:[%s1554 + $0x18] sm:$0xff]
    %v1559 = vld [vmem:[%s1554 + $0x20] sm:$0xff]
    %v1560 = vld [vmem:[%s1554 + $0x28] sm:$0xff]
    %v1561 = vld [vmem:[%s1554 + $0x30] sm:$0xff]
    %v1562 = vld [vmem:[%s1554 + $0x38] sm:$0xff]
    %v1563 = vld [vmem:[%s1554 + $0x40] sm:$0xff]
    %v1564 = vld [vmem:[%s1554 + $0x48] sm:$0xff]
    %v1565 = vld [vmem:[%s1554 + $0x50] sm:$0xff]
    %v1566 = vld [vmem:[%s1554 + $0x58] sm:$0xff]
    %v1567 = vld [vmem:[%s1554 + $0x60] sm:$0xff]
    %v1568 = vld [vmem:[%s1554 + $0x68] sm:$0xff]
    %v1569 = vld [vmem:[%s1554 + $0x70] sm:$0xff]
    %v1570 = vld [vmem:[%s1554 + $0x78] sm:$0xff]
    %v1571 = vld [vmem:[%s1554 + $0x80] sm:$0xff]
    %v1572 = vld [vmem:[%s1554 + $0x88] sm:$0xff]
    %v1573 = vld [vmem:[%s1554 + $0x90] sm:$0xff]
    %v1574 = vld [vmem:[%s1554 + $0x98] sm:$0xff]
    %v1575 = vld [vmem:[%s1554 + $0xa0] sm:$0xff]
    %v1576 = vld [vmem:[%s1554 + $0xa8] sm:$0xff]
    %v1577 = vld [vmem:[%s1554 + $0xb0] sm:$0xff]
    %v1578 = vld [vmem:[%s1554 + $0xb8] sm:$0xff]
    %v1579 = vld [vmem:[%s1554 + $0xc0] sm:$0xff]
    %v1580 = vld [vmem:[%s1554 + $0xc8] sm:$0xff]
    %v1581 = vld [vmem:[%s1554 + $0xd0] sm:$0xff]
    %v1582 = vpack.c.bf16 %v1558, %v1555
    %v1583 = vpack.c.bf16 %v1559, %v1556
    %v1584 = vpack.c.bf16 %v1560, %v1557
    %v1585 = vpack.c.bf16 %v1564, %v1561
    %v1586 = vpack.c.bf16 %v1565, %v1562
    %v1587 = vpack.c.bf16 %v1566, %v1563
    %v1588 = vpack.c.bf16 %v1570, %v1567
    %v1589 = vpack.c.bf16 %v1571, %v1568
    %v1590 = vpack.c.bf16 %v1572, %v1569
    %v1591 = vpack.c.bf16 %v1576, %v1573
    %v1592 = vpack.c.bf16 %v1577, %v1574
    %v1593 = vpack.c.bf16 %v1578, %v1575
    %v1594 = vpack.c.bf16 %v1579, %v1579
    %v1595 = vpack.c.bf16 %v1580, %v1580
    %v1596 = vpack.c.bf16 %v1581, %v1581
    %v1598 = vsel %vm1460, %v1594, 0
    %v1601 = vsel %vm1460, %v1595, 0
    %v1604 = vsel %vm1460, %v1596, 0
    %1606 = vmatprep.subr.bf16.mxu0 %v1583
    %1607 = vmatpush1.bf16.msra.mxu0 %v1582
    %1608 = vmatprep.subr.bf16.mxu0 %v1586
    %1609 = vmatpush1.bf16.msra.mxu0 %v1585
    %1610 = vmatprep.subr.bf16.mxu0 %v1589
    %1611 = vmatpush1.bf16.msra.mxu0 %v1588
    %1612 = vmatprep.subr.bf16.mxu0 %v1592
    %1613 = vmatpush1.bf16.msra.mxu0 %v1591
    %1614 = vmatprep.subr.bf16.mxu0 %v1601
    %1615 = vmatpush1.bf16.msra.mxu0 %v1598
    %1616 = vmatprep.subr.bf16.mxu0 0
    %1617 = vmatpush1.bf16.msra.mxu0 0
    %1618 = vmatprep.subr.bf16.mxu0 0
    %1619 = vmatpush1.bf16.msra.mxu0 0
    %1620 = vmatprep.subr.bf16.mxu0 0
    %1621 = vmatpush1.bf16.msra.mxu0 0
    %1622 = vmatprep.subr.bf16.mxu0 0
    %1623 = vmatpush1.bf16.msra.mxu0 0
    %1624 = vmatprep.subr.bf16.mxu0 0
    %1625 = vmatpush1.bf16.msra.mxu0 0
    %1626 = vmatprep.subr.bf16.mxu0 0
    %1627 = vmatpush1.bf16.msra.mxu0 0
    %1628 = vmatprep.subr.bf16.mxu0 0
    %1629 = vmatpush1.bf16.msra.mxu0 0
    %1630 = vmatprep.subr.bf16.mxu0 0
    %1631 = vmatpush1.bf16.msra.mxu0 0
    %1632 = vmatprep.subr.bf16.mxu0 0
    %1633 = vmatpush1.bf16.msra.mxu0 0
    %1634 = vmatprep.subr.bf16.mxu0 0
    %1635 = vmatpush1.bf16.msra.mxu0 0
    %1636 = vmatprep.subr.bf16.mxu0 0
    %1637 = vmatpush1.bf16.msra.mxu0 0
    %1638 = vmatprep.mubr.bf16.mxu0 0
    %1639 = vmatmul.mubr.bf16.gmra.mrb[0].mxu0 %v1458
    %v1640 = vpop.f32.mrb[0].mxu0
    %v1641 = vadd.f32 0.0, %v1640
    %v1642 = vpop.f32.mrb[0].mxu0
    %v1643 = vadd.f32 0.0, %v1642
    %v1644 = vpop.f32.mrb[0].mxu0
    %v1645 = vpop.f32.mrb[0].mxu0
    %1646 = vdwg.mxu0
    %1647 = vmatprep.subr.bf16.mxu0 0
    %1648 = vmatpush1.bf16.msra.mxu0 %v1584
    %1649 = vmatprep.subr.bf16.mxu0 0
    %1650 = vmatpush1.bf16.msra.mxu0 %v1587
    %1651 = vmatprep.subr.bf16.mxu0 0
    %1652 = vmatpush1.bf16.msra.mxu0 %v1590
    %1653 = vmatprep.subr.bf16.mxu0 0
    %1654 = vmatpush1.bf16.msra.mxu0 %v1593
    %1655 = vmatprep.subr.bf16.mxu0 0
    %1656 = vmatpush1.bf16.msra.mxu0 %v1604
    %1657 = vmatprep.subr.bf16.mxu0 0
    %1658 = vmatpush1.bf16.msra.mxu0 0
    %1659 = vmatprep.subr.bf16.mxu0 0
    %1660 = vmatpush1.bf16.msra.mxu0 0
    %1661 = vmatprep.subr.bf16.mxu0 0
    %1662 = vmatpush1.bf16.msra.mxu0 0
    %1663 = vmatprep.subr.bf16.mxu0 0
    %1664 = vmatpush1.bf16.msra.mxu0 0
    %1665 = vmatprep.subr.bf16.mxu0 0
    %1666 = vmatpush1.bf16.msra.mxu0 0
    %1667 = vmatprep.subr.bf16.mxu0 0
    %1668 = vmatpush1.bf16.msra.mxu0 0
    %1669 = vmatprep.subr.bf16.mxu0 0
    %1670 = vmatpush1.bf16.msra.mxu0 0
    %1671 = vmatprep.subr.bf16.mxu0 0
    %1672 = vmatpush1.bf16.msra.mxu0 0
    %1673 = vmatprep.subr.bf16.mxu0 0
    %1674 = vmatpush1.bf16.msra.mxu0 0
    %1675 = vmatprep.subr.bf16.mxu0 0
    %1676 = vmatpush1.bf16.msra.mxu0 0
    %1677 = vmatprep.subr.bf16.mxu0 0
    %1678 = vmatpush1.bf16.msra.mxu0 0
    %1679 = vmatprep.mubr.bf16.mxu0 0
    %1680 = vmatmul.mubr.bf16.gmra.mrb[0].mxu0 %v1458
    %v1681 = vpop.f32.mrb[0].mxu0
    %v1682 = vadd.f32 0.0, %v1681
    %v1683 = vpop.f32.mrb[0].mxu0
    %v1684 = vpop.f32.mrb[0].mxu0
    %v1685 = vpop.f32.mrb[0].mxu0
    %1686 = vdwg.mxu0
    %1687 = vst [vmem:[%s931] sm:$0xff] %v1641
    %1688 = vst [vmem:[%s931 + $0x8] sm:$0xff] %v1643
    %1689 = vst.msk [vmem:[%s931 + $0x10] sm:$0xff] %vm814, %v1682
    %v1690 = vld [vmem:[#allocation6] sm:$0xff]
    %v1691 = vld [vmem:[#allocation6 + $0x8] sm:$0xff]
    %v1692 = vld [vmem:[#allocation6 + $0x10] sm:$0xff]
    %v1693 = vld [vmem:[#allocation6 + $0x18] sm:$0xff]
    %v1694 = vld [vmem:[#allocation6 + $0x20] sm:$0xff]
    %v1695 = vld [vmem:[#allocation6 + $0x28] sm:$0xff]
    %v1696 = vld [vmem:[#allocation18] sm:$0xff]
    %v1697 = vld [vmem:[#allocation19] sm:$0xff]
    %v1698 = vmul.f32 %v1690, %v947
    %v1699 = vmul.f32 %v1691, %v951
    %v1700 = vmul.f32 %v1692, %v955
    %v1701 = vmul.f32 %v1693, %v947
    %v1702 = vmul.f32 %v1694, %v951
    %v1703 = vmul.f32 %v1695, %v955
    %v1704 = vadd.f32 %v1698, %v1699
    %v1705 = vsel %vm814, %v1700, 0.0
    %v1706 = vadd.f32 %v1704, %v1705
    %1707 = vadd.xlane.f32.xlu0 %v1706
    %v1708 = vpop.xlane.xlu0 %1707
    %v1709 = vadd.f32 %v1701, %v1702
    %v1710 = vsel %vm814, %v1703, 0.0
    %v1711 = vadd.f32 %v1709, %v1710
    %1712 = vadd.xlane.f32.xlu0 %v1711
    %v1713 = vpop.xlane.xlu0 %1712
    %v1714 = vadd.f32 %v1708, %v1713
    %v1715 = vmul.f32 %v1698, %v1698
    %v1716 = vmul.f32 %v1699, %v1699
    %v1717 = vmul.f32 %v1700, %v1700
    %v1718 = vmul.f32 %v1701, %v1701
    %v1719 = vmul.f32 %v1702, %v1702
    %v1720 = vmul.f32 %v1703, %v1703
    %v1721 = vadd.f32 %v1715, %v1716
    %v1722 = vsel %vm814, %v1717, 0.0
    %v1723 = vadd.f32 %v1721, %v1722
    %1724 = vadd.xlane.f32.xlu0 %v1723
    %v1725 = vpop.xlane.xlu0 %1724
    %v1726 = vadd.f32 %v1718, %v1719
    %v1727 = vsel %vm814, %v1720, 0.0
    %v1728 = vadd.f32 %v1726, %v1727
    %1729 = vadd.xlane.f32.xlu0 %v1728
    %v1730 = vpop.xlane.xlu0 %1729
    %v1731 = vadd.f32 %v1725, %v1730
    %v1732 = vmul.f32 %v1714, 0.001953125
    %v1733 = vmul.f32 %v1731, 0.001953125
    %v1734 = vmul.f32 %v1732, %v1732
    %v1735 = vsub.f32 %v1733, %v1734
    %v1736 = vmax.f32 %v1735, 0.0
    %v1737 = vadd.f32 %v1736, 1e-05
    %v1738 = vrsqrt.pop %v1737
    %v1739 = vmul.f32 %v1696, %v1738
    %v1740 = vmul.f32 %v1732, %v1739
    %v1741 = vsub.f32 %v1697, %v1740
    %1743 = vset.pattern.permute.xlu0 0
    %1744 = vperm.xlu0 %1743, %v1739
    %v1745 = vpop.permute.xlu0 %1744
    %v1747 = vmul.f32 %v1690, %v1745
    %v1748 = vmul.f32 %v1691, %v1745
    %v1749 = vmul.f32 %v1692, %v1745
    %v1750 = vmul.f32 %v1693, %v1745
    %v1751 = vmul.f32 %v1694, %v1745
    %v1752 = vmul.f32 %v1695, %v1745
    %1754 = vset.pattern.permute.xlu0 0
    %1755 = vperm.xlu0 %1754, %v1741
    %v1756 = vpop.permute.xlu0 %1755
    %v1758 = vadd.f32 %v1747, %v1756
    %v1759 = vadd.f32 %v1748, %v1756
    %v1760 = vadd.f32 %v1749, %v1756
    %v1761 = vadd.f32 %v1750, %v1756
    %v1762 = vadd.f32 %v1751, %v1756
    %v1763 = vadd.f32 %v1752, %v1756
    %v1764 = vmax.f32 %v1758, 0.0
    %v1765 = vmax.f32 %v1759, 0.0
    %v1766 = vmax.f32 %v1760, 0.0
    %v1767 = vmax.f32 %v1761, 0.0
    %v1768 = vmax.f32 %v1762, 0.0
    %v1769 = vmax.f32 %v1763, 0.0
    %vm1770 = vcmask 130048
    %1771 = vst.msk [vmem:[#allocation21] sm:$0xff] %vm1770, %v1764
    %1772 = vst.msk [vmem:[#allocation21 + $0x10] sm:$0xff] %vm1770, %v1767
    %1775 = vrot.lane.b32.xlu0 %v1764, 126
    %v1776 = vpop.permute.xlu0 %1775
    %1777 = vrot.lane.b32.xlu0 %v1767, 126
    %v1778 = vpop.permute.xlu0 %1777
    %vm1781 = vcmask 261248
    %1782 = vst.msk [vmem:[#allocation21] sm:$0xff] %vm1781, %v1776
    %1783 = vst.msk [vmem:[#allocation21 + $0x10] sm:$0xff] %vm1781, %v1778
    %1784 = vrot.lane.b32.xlu0 %v1764, 124
    %v1785 = vpop.permute.xlu0 %1784
    %1786 = vrot.lane.b32.xlu0 %v1767, 124
    %v1787 = vpop.permute.xlu0 %1786
    %vm1790 = vcmask 392448
    %1791 = vst.msk [vmem:[#allocation21] sm:$0xff] %vm1790, %v1785
    %1792 = vst.msk [vmem:[#allocation21 + $0x10] sm:$0xff] %vm1790, %v1787
    %1793 = vrot.lane.b32.xlu0 %v1764, 122
    %v1794 = vpop.permute.xlu0 %1793
    %1795 = vrot.lane.b32.xlu0 %v1767, 122
    %v1796 = vpop.permute.xlu0 %1795
    %vm1799 = vcmask 523648
    %1800 = vst.msk [vmem:[#allocation21] sm:$0xff] %vm1799, %v1794
    %1801 = vst.msk [vmem:[#allocation21 + $0x10] sm:$0xff] %vm1799, %v1796
    %1802 = vrot.lane.b32.xlu0 %v1764, 120
    %v1803 = vpop.permute.xlu0 %1802
    %1804 = vrot.lane.b32.xlu0 %v1767, 120
    %v1805 = vpop.permute.xlu0 %1804
    %vm1808 = vcmask 654848
    %1809 = vst.msk [vmem:[#allocation21] sm:$0xff] %vm1808, %v1803
    %1810 = vst.msk [vmem:[#allocation21 + $0x10] sm:$0xff] %vm1808, %v1805
    %1811 = vrot.lane.b32.xlu0 %v1764, 118
    %v1812 = vpop.permute.xlu0 %1811
    %1813 = vrot.lane.b32.xlu0 %v1767, 118
    %v1814 = vpop.permute.xlu0 %1813
    %vm1817 = vcmask 786048
    %1818 = vst.msk [vmem:[#allocation21] sm:$0xff] %vm1817, %v1812
    %1819 = vst.msk [vmem:[#allocation21 + $0x10] sm:$0xff] %vm1817, %v1814
    %1820 = vrot.lane.b32.xlu0 %v1764, 116
    %v1821 = vpop.permute.xlu0 %1820
    %1822 = vrot.lane.b32.xlu0 %v1767, 116
    %v1823 = vpop.permute.xlu0 %1822
    %vm1826 = vcmask 917248
    %1827 = vst.msk [vmem:[#allocation21] sm:$0xff] %vm1826, %v1821
    %1828 = vst.msk [vmem:[#allocation21 + $0x10] sm:$0xff] %vm1826, %v1823
    %1831 = vrot.lane.b32.xlu0 %v1764, 114
    %v1832 = vpop.permute.xlu0 %1831
    %1833 = vrot.lane.b32.xlu0 %v1765, 114
    %v1834 = vpop.permute.xlu0 %1833
    %1835 = vrot.lane.b32.xlu0 %v1767, 114
    %v1836 = vpop.permute.xlu0 %1835
    %1837 = vrot.lane.b32.xlu0 %v1768, 114
    %v1838 = vpop.permute.xlu0 %1837
    %vm1839 = vcmask 932864
    %v1840 = vsel %vm1839, %v1832, %v1834
    %v1841 = vsel %vm1839, %v1836, %v1838
    %vm1844 = vcmask 1048448
    %1845 = vst.msk [vmem:[#allocation21] sm:$0xff] %vm1844, %v1840
    %1846 = vst.msk [vmem:[#allocation21 + $0x10] sm:$0xff] %vm1844, %v1841
    %1847 = vrot.lane.b32.xlu0 %v1765, 112
    %v1848 = vpop.permute.xlu0 %1847
    %1849 = vrot.lane.b32.xlu0 %v1768, 112
    %v1850 = vpop.permute.xlu0 %1849
    %1853 = vst.msk [vmem:[#allocation21 + $0x8] sm:$0xff] %vm1770, %v1848
    %1854 = vst.msk [vmem:[#allocation21 + $0x18] sm:$0xff] %vm1770, %v1850
    %1855 = vrot.lane.b32.xlu0 %v1765, 110
    %v1856 = vpop.permute.xlu0 %1855
    %1857 = vrot.lane.b32.xlu0 %v1768, 110
    %v1858 = vpop.permute.xlu0 %1857
    %1861 = vst.msk [vmem:[#allocation21 + $0x8] sm:$0xff] %vm1781, %v1856
    %1862 = vst.msk [vmem:[#allocation21 + $0x18] sm:$0xff] %vm1781, %v1858
    %1863 = vrot.lane.b32.xlu0 %v1765, 108
    %v1864 = vpop.permute.xlu0 %1863
    %1865 = vrot.lane.b32.xlu0 %v1768, 108
    %v1866 = vpop.permute.xlu0 %1865
    %1869 = vst.msk [vmem:[#allocation21 + $0x8] sm:$0xff] %vm1790, %v1864
    %1870 = vst.msk [vmem:[#allocation21 + $0x18] sm:$0xff] %vm1790, %v1866
    %1871 = vrot.lane.b32.xlu0 %v1765, 106
    %v1872 = vpop.permute.xlu0 %1871
    %1873 = vrot.lane.b32.xlu0 %v1768, 106
    %v1874 = vpop.permute.xlu0 %1873
    %1877 = vst.msk [vmem:[#allocation21 + $0x8] sm:$0xff] %vm1799, %v1872
    %1878 = vst.msk [vmem:[#allocation21 + $0x18] sm:$0xff] %vm1799, %v1874
    %1879 = vrot.lane.b32.xlu0 %v1765, 104
    %v1880 = vpop.permute.xlu0 %1879
    %1881 = vrot.lane.b32.xlu0 %v1768, 104
    %v1882 = vpop.permute.xlu0 %1881
    %1885 = vst.msk [vmem:[#allocation21 + $0x8] sm:$0xff] %vm1808, %v1880
    %1886 = vst.msk [vmem:[#allocation21 + $0x18] sm:$0xff] %vm1808, %v1882
    %1887 = vrot.lane.b32.xlu0 %v1765, 102
    %v1888 = vpop.permute.xlu0 %1887
    %1889 = vrot.lane.b32.xlu0 %v1768, 102
    %v1890 = vpop.permute.xlu0 %1889
    %1893 = vst.msk [vmem:[#allocation21 + $0x8] sm:$0xff] %vm1817, %v1888
    %1894 = vst.msk [vmem:[#allocation21 + $0x18] sm:$0xff] %vm1817, %v1890
    %1897 = vrot.lane.b32.xlu0 %v1765, 100
    %v1898 = vpop.permute.xlu0 %1897
    %1899 = vrot.lane.b32.xlu0 %v1766, 100
    %v1900 = vpop.permute.xlu0 %1899
    %1901 = vrot.lane.b32.xlu0 %v1768, 100
    %v1902 = vpop.permute.xlu0 %1901
    %1903 = vrot.lane.b32.xlu0 %v1769, 100
    %v1904 = vpop.permute.xlu0 %1903
    %vm1905 = vcmask 818176
    %v1906 = vsel %vm1905, %v1898, %v1900
    %v1907 = vsel %vm1905, %v1902, %v1904
    %1910 = vst.msk [vmem:[#allocation21 + $0x8] sm:$0xff] %vm1826, %v1906
    %1911 = vst.msk [vmem:[#allocation21 + $0x18] sm:$0xff] %vm1826, %v1907
    %1912 = vrot.lane.b32.xlu0 %v1766, 98
    %v1913 = vpop.permute.xlu0 %1912
    %1914 = vrot.lane.b32.xlu0 %v1769, 98
    %v1915 = vpop.permute.xlu0 %1914
    %1918 = vst.msk [vmem:[#allocation21 + $0x8] sm:$0xff] %vm1844, %v1913
    %1919 = vst.msk [vmem:[#allocation21 + $0x18] sm:$0xff] %vm1844, %v1915
    // Predicated region
    $region66: #{input_conv.1} parent=1 // pred_check
      _
    $region67: #{input_conv.1} parent=1 // pred_check_branch
      %1921 = sbr.rel (0) target = $region69
    $region68: #{input_conv.1} parent=1 // pred_region
      %s1923 = ssub.s32 512, 512
      %1924 = vsyncadd [#allocation9], %s1923
      %s1925 = sshll.u32 [#allocation21], 4
      %s1926 = int_to_ptr.vmem [resolvable:$true] %s1925
      %1931 = dma.vmem_to_hbm [thread:$0]  %s1926, 512, %s8, [#allocation9], 256, 256, 16
    $region69: #{input_conv.1} parent=1 // pred_fallthru
      _
    // Predicated region
    $region70: #{input_conv.1} parent=1 // pred_check
      _
    $region71: #{input_conv.1} parent=1 // pred_check_branch
      %1933 = sbr.rel (0) target = $region73
    $region72: #{input_conv.1} parent=1 // pred_region
      %1934 = dma.done [#allocation9], 512
    $region73: #{input_conv.1} parent=1 // pred_fallthru
      _
    %1935 = vsyncpa [#allocation8], 1
    %1936 = vsyncpa [#allocation11], 1
    %1937 = vsyncpa [#allocation14], 1
    %1938 = vsyncpa [#allocation17], 1
    %1939 = vsyncpa [#allocation20], 1
    %1940 = vsyncpa [#allocation9], 1

</llo_original>
